<compile_context>
chip_gen: v5e
topology: v5e:2x2
jax: 0.10.0
libtpu: 0.0.40
codegen_flags: <defaults>
</compile_context>

<pallas_src>
import jax
import jax.numpy as jnp
from jax.experimental import pallas as pl
from jax.experimental.pallas import tpu as pltpu


def _round_up(x, m):
    return ((x + m - 1) // m) * m


def _vmem_budgets():
    """Generation-aware (pipeline block budget, vmem_limit_bytes)."""
    try:
        cap = int(pltpu.get_tpu_info().vmem_capacity_bytes)
    except Exception:
        cap = 64 * 1024 * 1024            # conservative fallback (v7x per-TC VMEM)
    if cap <= 64 * 1024 * 1024:           # v7x-class: leave headroom for Mosaic
        return 22 * 1024 * 1024, 40 * 1024 * 1024
    return 88 * 1024 * 1024, 112 * 1024 * 1024   # v5e / v6e (128 MiB physical)


def _make_spectral_mul_kernel(B, Ci, Co):
    """Per mode tile: out[b*Co+o, :] = sum_i x[b*Ci+i, :] * w[i*Co+o, :] (complex)."""
    BC = B * Co

    def kernel(xr_ref, xi_ref, wr_ref, wi_ref, outr_ref, outi_ref):
        tm = outr_ref.shape[-1]

        def rep_x(ref, i):
            # (B*Co, tm): batch row b of channel i repeated Co times.  The
            # replication is sublane-broadcast + concat (XLU slot), so the MAC
            # below runs on full-sublane slabs instead of half-empty vregs.
            parts = [jnp.broadcast_to(ref[pl.ds(b * Ci + i, 1), :], (Co, tm))
                     for b in range(B)]
            return parts[0] if B == 1 else jnp.concatenate(parts, axis=0)

        def tile_w(ref, i):
            slab = ref[pl.ds(i * Co, Co), :].astype(jnp.float32)     # (Co, tm)
            return slab if B == 1 else jnp.concatenate([slab] * B, axis=0)

        def mac(i, acc_r, acc_i):
            xre = rep_x(xr_ref, i)
            xie = rep_x(xi_ref, i)
            wre = tile_w(wr_ref, i)
            wie = tile_w(wi_ref, i)
            # Naive 4-mul complex MAC, accumulated in place (mul and add share
            # the VALU slot; no Karatsuba temporaries -> less vreg pressure).
            acc_r = acc_r + xre * wre
            acc_r = acc_r - xie * wie
            acc_i = acc_i + xre * wie
            acc_i = acc_i + xie * wre
            return acc_r, acc_i

        acc_r = jnp.zeros((BC, tm), jnp.float32)
        acc_i = jnp.zeros((BC, tm), jnp.float32)
        if Ci <= 8:
            for i in range(Ci):                       # small static Ci: unroll
                acc_r, acc_i = mac(i, acc_r, acc_i)
        else:                                         # bound live ranges for big Ci
            acc_r, acc_i = jax.lax.fori_loop(
                0, Ci, lambda i, c: mac(i, c[0], c[1]), (acc_r, acc_i))

        outr_ref[...] = acc_r                         # single unmasked (B*Co, tm) store
        outi_ref[...] = acc_i

    return kernel


def _compl_mul_modes(xr, xi, wr, wi, B, Ci, Co, M4):
    """xr/xi: (B*Ci, Mp) f32; wr/wi: (Ci*Co, Mp) bf16/f32. Returns (B*Co, M4) c64."""
    Mp = xr.shape[-1]
    assert wr.shape[-1] == Mp and Mp % 128 == 0 and Mp >= M4
    w_bytes = jnp.dtype(wr.dtype).itemsize
    block_budget, vmem_limit = _vmem_budgets()

    # VMEM bytes per lane of the mode axis: double-buffered pipeline buffers for
    # the x / w / out planes PLUS the kernel's own live state (acc_r/acc_i,
    # replicated x/w operands, product temporaries ~= 10 f32 (B*Co)-row values).
    per_lane = (2 * (2 * Ci * B * 4 + 2 * Ci * Co * w_bytes + 2 * B * Co * 4)
                + 10 * B * Co * 4)
    tm_budget = max(128, (block_budget // per_lane) // 128 * 128)

    # Guarantee >=2 tiles (>=4 when the mode axis allows) so the "parallel" grid
    # axis shards across TensorCores and DMA overlaps compute.
    if Mp >= 4 * 256:
        desired_tiles = 4
    elif Mp >= 2 * 128:
        desired_tiles = 2
    else:
        desired_tiles = 1
    tm_tiles = max(128, (Mp // desired_tiles) // 128 * 128)
    tm = min(tm_budget, tm_tiles, 1024)    # 512-1024 lanes already saturate HBM roofline
    n_tiles = pl.cdiv(Mp, tm)              # partial last tile is fine (pad lanes sliced off)

    x_spec = pl.BlockSpec((B * Ci, tm), lambda t: (0, t))
    w_spec = pl.BlockSpec((Ci * Co, tm), lambda t: (0, t))
    o_spec = pl.BlockSpec((B * Co, tm), lambda t: (0, t))

    flops = int(8 * B * Ci * Co * Mp)
    bytes_accessed = int(2 * B * Ci * Mp * 4 + 2 * Ci * Co * Mp * w_bytes
                         + 2 * B * Co * Mp * 4)

    outr, outi = pl.pallas_call(
        _make_spectral_mul_kernel(B, Ci, Co),
        grid=(n_tiles,),
        in_specs=[x_spec, x_spec, w_spec, w_spec],
        out_specs=[o_spec, o_spec],
        out_shape=[jax.ShapeDtypeStruct((B * Co, Mp), jnp.float32),
                   jax.ShapeDtypeStruct((B * Co, Mp), jnp.float32)],
        compiler_params=pltpu.CompilerParams(
            dimension_semantics=("parallel",),       # mode tiles are independent
            vmem_limit_bytes=vmem_limit),
        cost_estimate=pl.CostEstimate(flops=flops, transcendentals=0,
                                      bytes_accessed=bytes_accessed),
    )(xr, xi, wr, wi)

    # TODO(synk): on v5e emit bf16 outr/outi (upcast here) to halve the output
    # HBM stream if irfftn accuracy tolerates it.
    return (outr[:, :M4] + 1j * outi[:, :M4]).astype(jnp.complex64)


def prepare_spectral_weights(weights, modes1, modes2, modes3,
                             weight_dtype=jnp.bfloat16):
    """One-time init pass: flatten the 4 complex corner weights (Ci,Co,m1,m2,m3)
    into lane-dense real/imag planes of shape (Ci*Co, round_up(4*m1*m2*m3, 128))."""
    w_list = list(weights)
    Ci, Co = w_list[0].shape[0], w_list[0].shape[1]
    M4 = 4 * modes1 * modes2 * modes3
    Mp = _round_up(M4, 128)
    w_stack = jnp.stack(w_list, axis=2)                    # (Ci, Co, 4, m1, m2, m3)
    wr = jnp.real(w_stack).astype(weight_dtype).reshape(Ci * Co, M4)
    wi = jnp.imag(w_stack).astype(weight_dtype).reshape(Ci * Co, M4)
    if Mp != M4:
        pad = ((0, 0), (0, Mp - M4))
        wr, wi = jnp.pad(wr, pad), jnp.pad(wi, pad)
    return wr, wi


def spectral_conv3d_uno(x, wr_flat, wi_flat, dim1, dim2, dim3,
                        modes1, modes2, modes3, use_pallas=True):
    """x: (B, in_codim, D1, D2, D3) f32 -> (B, out_codim, dim1, dim2, dim3) f32.
    wr_flat / wi_flat are the pre-flattened weight planes from
    prepare_spectral_weights (shared by both the Pallas and reference paths)."""
    B, Ci = x.shape[0], x.shape[1]
    assert wr_flat.shape[0] % Ci == 0
    Co = wr_flat.shape[0] // Ci
    m1, m2, m3 = modes1, modes2, modes3
    M4 = 4 * m1 * m2 * m3
    # Corner writes into out_ft must not overlap (matches torch semantics only
    # when they don't).
    assert 2 * m1 <= dim1 and 2 * m2 <= dim2 and m3 <= dim3 // 2 + 1

    x_ft = jnp.fft.rfftn(x, axes=(-3, -2, -1), norm='forward')  # (B,Ci,D1,D2,D3//2+1)

    # Gather the 4 retained mode corners, fold them onto a single mode axis.
    xc = jnp.stack([
        x_ft[:, :, :m1, :m2, :m3],
        x_ft[:, :, -m1:, :m2, :m3],
        x_ft[:, :, :m1, -m2:, :m3],
        x_ft[:, :, -m1:, -m2:, :m3],
    ], axis=2)                                               # (B, Ci, 4, m1, m2, m3)

    if use_pallas:
        Mp = wr_flat.shape[-1]
        x_flat = xc.reshape(B * Ci, M4)                      # row = b*Ci + i (no transpose)
        xr = jnp.real(x_flat).astype(jnp.float32)
        xi = jnp.imag(x_flat).astype(jnp.float32)
        if Mp != M4:
            pad = ((0, 0), (0, Mp - M4))
            xr, xi = jnp.pad(xr, pad), jnp.pad(xi, pad)
        out_flat = _compl_mul_modes(xr, xi, wr_flat, wi_flat, B, Ci, Co, M4)
        oc = out_flat.reshape(B, Co, 4, m1, m2, m3)
    else:  # pure-JAX reference path (same quantized weight planes)
        w_c = (wr_flat[:, :M4].astype(jnp.float32)
               + 1j * wi_flat[:, :M4].astype(jnp.float32)
               ).reshape(Ci, Co, 4, m1, m2, m3).astype(jnp.complex64)
        oc = jnp.einsum('bicxyz,iocxyz->bocxyz', xc, w_c)

    out_ft = jnp.zeros((B, Co, dim1, dim2, dim3 // 2 + 1), dtype=jnp.complex64)
    out_ft = out_ft.at[:, :, :m1, :m2, :m3].set(oc[:, :, 0])
    out_ft = out_ft.at[:, :, -m1:, :m2, :m3].set(oc[:, :, 1])
    out_ft = out_ft.at[:, :, :m1, -m2:, :m3].set(oc[:, :, 2])
    out_ft = out_ft.at[:, :, -m1:, -m2:, :m3].set(oc[:, :, 3])

    return jnp.fft.irfftn(out_ft, s=(dim1, dim2, dim3), axes=(-3, -2, -1),
                          norm='forward')


if __name__ == "__main__":
    # Module hyper-parameters (small, FFT-friendly)
    in_codim, out_codim = 4, 4
    dim1, dim2, dim3 = 16, 16, 8             # output grid
    modes1, modes2, modes3 = 6, 6, 4         # Fourier modes
    B = 2
    D1, D2, D3 = 16, 16, 8                   # input grid

    key = jax.random.PRNGKey(0)
    kx, kw = jax.random.split(key)
    scale = (1.0 / (2.0 * in_codim)) ** 0.5

    wkeys = jax.random.split(kw, 8)
    wshape = (in_codim, out_codim, modes1, modes2, modes3)
    weights = []
    for i in range(4):
        wr = jax.random.normal(wkeys[2 * i], wshape, dtype=jnp.float32)
        wi = jax.random.normal(wkeys[2 * i + 1], wshape, dtype=jnp.float32)
        weights.append((scale * (wr + 1j * wi)).astype(jnp.complex64))

    x = jax.random.normal(kx, (B, in_codim, D1, D2, D3), dtype=jnp.float32)

    # One-time weight flatten / bf16 quantize (the "at init" pass).
    wr_flat, wi_flat = prepare_spectral_weights(weights, modes1, modes2, modes3)

    fwd = jax.jit(lambda xx: spectral_conv3d_uno(
        xx, wr_flat, wi_flat, dim1, dim2, dim3, modes1, modes2, modes3,
        use_pallas=True))
    out = jax.block_until_ready(fwd(x))

    # Cross-check the Pallas hot path against the pure-JAX einsum reference
    # (both paths use the identical bf16-quantized weight planes).
    ref = jax.block_until_ready(spectral_conv3d_uno(
        x, wr_flat, wi_flat, dim1, dim2, dim3, modes1, modes2, modes3,
        use_pallas=False))

    assert out.shape == (B, out_codim, dim1, dim2, dim3)
    assert jnp.allclose(out, ref, rtol=2e-4, atol=2e-5), "mismatch vs reference"

    print("KERNEL_OK")
</pallas_src>

<mosaic_0001>
module attributes {stable_mosaic.version = 11 : i64} {
  func.func @kernel(%arg0: i32, %arg1: memref<8x256xf32, #tpu.memory_space<vmem>>, %arg2: memref<8x256xf32, #tpu.memory_space<vmem>>, %arg3: memref<16x256xbf16, #tpu.memory_space<vmem>>, %arg4: memref<16x256xbf16, #tpu.memory_space<vmem>>, %arg5: memref<8x256xf32, #tpu.memory_space<vmem>>, %arg6: memref<8x256xf32, #tpu.memory_space<vmem>>) attributes {dimension_semantics = [#tpu.dimension_semantics<parallel>], iteration_bounds = array<i64: 3>, scalar_prefetch = 0 : i64, scratch_operands = 0 : i64, tpu.core_type = #tpu.core_type<tc>, window_params = [{transform_indices = @transform_0, window_bounds = array<i64: 8, 256>}, {transform_indices = @transform_1, window_bounds = array<i64: 8, 256>}, {transform_indices = @transform_2, window_bounds = array<i64: 16, 256>}, {transform_indices = @transform_3, window_bounds = array<i64: 16, 256>}, {transform_indices = @transform_4, window_bounds = array<i64: 8, 256>}, {transform_indices = @transform_5, window_bounds = array<i64: 8, 256>}]} {
    %cst = arith.constant 0.000000e+00 : f32
    %0 = vector.broadcast %cst : f32 to vector<8x256xf32>
    %cst_0 = arith.constant 0.000000e+00 : f32
    %1 = vector.broadcast %cst_0 : f32 to vector<8x256xf32>
    %c0 = arith.constant 0 : index
    %c0_1 = arith.constant 0 : index
    %2 = vector.load %arg1[%c0, %c0_1] : memref<8x256xf32, #tpu.memory_space<vmem>>, vector<1x256xf32>
    %3 = vector.shape_cast %2 : vector<1x256xf32> to vector<1x256xf32>
    %4 = vector.broadcast %3 : vector<1x256xf32> to vector<4x256xf32>
    %c4 = arith.constant 4 : index
    %c0_2 = arith.constant 0 : index
    %5 = vector.load %arg1[%c4, %c0_2] : memref<8x256xf32, #tpu.memory_space<vmem>>, vector<1x256xf32>
    %6 = vector.shape_cast %5 : vector<1x256xf32> to vector<1x256xf32>
    %7 = vector.broadcast %6 : vector<1x256xf32> to vector<4x256xf32>
    %8 = tpu.concatenate %4, %7 in 0 : vector<4x256xf32>, vector<4x256xf32> -> vector<8x256xf32>
    %c0_3 = arith.constant 0 : index
    %c0_4 = arith.constant 0 : index
    %9 = vector.load %arg2[%c0_3, %c0_4] : memref<8x256xf32, #tpu.memory_space<vmem>>, vector<1x256xf32>
    %10 = vector.shape_cast %9 : vector<1x256xf32> to vector<1x256xf32>
    %11 = vector.broadcast %10 : vector<1x256xf32> to vector<4x256xf32>
    %c4_5 = arith.constant 4 : index
    %c0_6 = arith.constant 0 : index
    %12 = vector.load %arg2[%c4_5, %c0_6] : memref<8x256xf32, #tpu.memory_space<vmem>>, vector<1x256xf32>
    %13 = vector.shape_cast %12 : vector<1x256xf32> to vector<1x256xf32>
    %14 = vector.broadcast %13 : vector<1x256xf32> to vector<4x256xf32>
    %15 = tpu.concatenate %11, %14 in 0 : vector<4x256xf32>, vector<4x256xf32> -> vector<8x256xf32>
    %c0_7 = arith.constant 0 : index
    %c0_8 = arith.constant 0 : index
    %16 = vector.load %arg3[%c0_7, %c0_8] : memref<16x256xbf16, #tpu.memory_space<vmem>>, vector<4x256xbf16>
    %17 = arith.extf %16 : vector<4x256xbf16> to vector<4x256xf32>
    %18 = tpu.concatenate %17, %17 in 0 : vector<4x256xf32>, vector<4x256xf32> -> vector<8x256xf32>
    %c0_9 = arith.constant 0 : index
    %c0_10 = arith.constant 0 : index
    %19 = vector.load %arg4[%c0_9, %c0_10] : memref<16x256xbf16, #tpu.memory_space<vmem>>, vector<4x256xbf16>
    %20 = arith.extf %19 : vector<4x256xbf16> to vector<4x256xf32>
    %21 = tpu.concatenate %20, %20 in 0 : vector<4x256xf32>, vector<4x256xf32> -> vector<8x256xf32>
    %22 = arith.mulf %8, %18 : vector<8x256xf32>
    %23 = arith.addf %0, %22 : vector<8x256xf32>
    %24 = arith.mulf %15, %21 : vector<8x256xf32>
    %25 = arith.subf %23, %24 : vector<8x256xf32>
    %26 = arith.mulf %8, %21 : vector<8x256xf32>
    %27 = arith.addf %1, %26 : vector<8x256xf32>
    %28 = arith.mulf %15, %18 : vector<8x256xf32>
    %29 = arith.addf %27, %28 : vector<8x256xf32>
    %c1 = arith.constant 1 : index
    %c0_11 = arith.constant 0 : index
    %30 = vector.load %arg1[%c1, %c0_11] : memref<8x256xf32, #tpu.memory_space<vmem>>, vector<1x256xf32>
    %31 = vector.shape_cast %30 : vector<1x256xf32> to vector<1x256xf32>
    %32 = vector.broadcast %31 : vector<1x256xf32> to vector<4x256xf32>
    %c5 = arith.constant 5 : index
    %c0_12 = arith.constant 0 : index
    %33 = vector.load %arg1[%c5, %c0_12] : memref<8x256xf32, #tpu.memory_space<vmem>>, vector<1x256xf32>
    %34 = vector.shape_cast %33 : vector<1x256xf32> to vector<1x256xf32>
    %35 = vector.broadcast %34 : vector<1x256xf32> to vector<4x256xf32>
    %36 = tpu.concatenate %32, %35 in 0 : vector<4x256xf32>, vector<4x256xf32> -> vector<8x256xf32>
    %c1_13 = arith.constant 1 : index
    %c0_14 = arith.constant 0 : index
    %37 = vector.load %arg2[%c1_13, %c0_14] : memref<8x256xf32, #tpu.memory_space<vmem>>, vector<1x256xf32>
    %38 = vector.shape_cast %37 : vector<1x256xf32> to vector<1x256xf32>
    %39 = vector.broadcast %38 : vector<1x256xf32> to vector<4x256xf32>
    %c5_15 = arith.constant 5 : index
    %c0_16 = arith.constant 0 : index
    %40 = vector.load %arg2[%c5_15, %c0_16] : memref<8x256xf32, #tpu.memory_space<vmem>>, vector<1x256xf32>
    %41 = vector.shape_cast %40 : vector<1x256xf32> to vector<1x256xf32>
    %42 = vector.broadcast %41 : vector<1x256xf32> to vector<4x256xf32>
    %43 = tpu.concatenate %39, %42 in 0 : vector<4x256xf32>, vector<4x256xf32> -> vector<8x256xf32>
    %c4_17 = arith.constant 4 : index
    %c0_18 = arith.constant 0 : index
    %44 = vector.load %arg3[%c4_17, %c0_18] : memref<16x256xbf16, #tpu.memory_space<vmem>>, vector<4x256xbf16>
    %45 = arith.extf %44 : vector<4x256xbf16> to vector<4x256xf32>
    %46 = tpu.concatenate %45, %45 in 0 : vector<4x256xf32>, vector<4x256xf32> -> vector<8x256xf32>
    %c4_19 = arith.constant 4 : index
    %c0_20 = arith.constant 0 : index
    %47 = vector.load %arg4[%c4_19, %c0_20] : memref<16x256xbf16, #tpu.memory_space<vmem>>, vector<4x256xbf16>
    %48 = arith.extf %47 : vector<4x256xbf16> to vector<4x256xf32>
    %49 = tpu.concatenate %48, %48 in 0 : vector<4x256xf32>, vector<4x256xf32> -> vector<8x256xf32>
    %50 = arith.mulf %36, %46 : vector<8x256xf32>
    %51 = arith.addf %25, %50 : vector<8x256xf32>
    %52 = arith.mulf %43, %49 : vector<8x256xf32>
    %53 = arith.subf %51, %52 : vector<8x256xf32>
    %54 = arith.mulf %36, %49 : vector<8x256xf32>
    %55 = arith.addf %29, %54 : vector<8x256xf32>
    %56 = arith.mulf %43, %46 : vector<8x256xf32>
    %57 = arith.addf %55, %56 : vector<8x256xf32>
    %c2 = arith.constant 2 : index
    %c0_21 = arith.constant 0 : index
    %58 = vector.load %arg1[%c2, %c0_21] : memref<8x256xf32, #tpu.memory_space<vmem>>, vector<1x256xf32>
    %59 = vector.shape_cast %58 : vector<1x256xf32> to vector<1x256xf32>
    %60 = vector.broadcast %59 : vector<1x256xf32> to vector<4x256xf32>
    %c6 = arith.constant 6 : index
    %c0_22 = arith.constant 0 : index
    %61 = vector.load %arg1[%c6, %c0_22] : memref<8x256xf32, #tpu.memory_space<vmem>>, vector<1x256xf32>
    %62 = vector.shape_cast %61 : vector<1x256xf32> to vector<1x256xf32>
    %63 = vector.broadcast %62 : vector<1x256xf32> to vector<4x256xf32>
    %64 = tpu.concatenate %60, %63 in 0 : vector<4x256xf32>, vector<4x256xf32> -> vector<8x256xf32>
    %c2_23 = arith.constant 2 : index
    %c0_24 = arith.constant 0 : index
    %65 = vector.load %arg2[%c2_23, %c0_24] : memref<8x256xf32, #tpu.memory_space<vmem>>, vector<1x256xf32>
    %66 = vector.shape_cast %65 : vector<1x256xf32> to vector<1x256xf32>
    %67 = vector.broadcast %66 : vector<1x256xf32> to vector<4x256xf32>
    %c6_25 = arith.constant 6 : index
    %c0_26 = arith.constant 0 : index
    %68 = vector.load %arg2[%c6_25, %c0_26] : memref<8x256xf32, #tpu.memory_space<vmem>>, vector<1x256xf32>
    %69 = vector.shape_cast %68 : vector<1x256xf32> to vector<1x256xf32>
    %70 = vector.broadcast %69 : vector<1x256xf32> to vector<4x256xf32>
    %71 = tpu.concatenate %67, %70 in 0 : vector<4x256xf32>, vector<4x256xf32> -> vector<8x256xf32>
    %c8 = arith.constant 8 : index
    %c0_27 = arith.constant 0 : index
    %72 = vector.load %arg3[%c8, %c0_27] : memref<16x256xbf16, #tpu.memory_space<vmem>>, vector<4x256xbf16>
    %73 = arith.extf %72 : vector<4x256xbf16> to vector<4x256xf32>
    %74 = tpu.concatenate %73, %73 in 0 : vector<4x256xf32>, vector<4x256xf32> -> vector<8x256xf32>
    %c8_28 = arith.constant 8 : index
    %c0_29 = arith.constant 0 : index
    %75 = vector.load %arg4[%c8_28, %c0_29] : memref<16x256xbf16, #tpu.memory_space<vmem>>, vector<4x256xbf16>
    %76 = arith.extf %75 : vector<4x256xbf16> to vector<4x256xf32>
    %77 = tpu.concatenate %76, %76 in 0 : vector<4x256xf32>, vector<4x256xf32> -> vector<8x256xf32>
    %78 = arith.mulf %64, %74 : vector<8x256xf32>
    %79 = arith.addf %53, %78 : vector<8x256xf32>
    %80 = arith.mulf %71, %77 : vector<8x256xf32>
    %81 = arith.subf %79, %80 : vector<8x256xf32>
    %82 = arith.mulf %64, %77 : vector<8x256xf32>
    %83 = arith.addf %57, %82 : vector<8x256xf32>
    %84 = arith.mulf %71, %74 : vector<8x256xf32>
    %85 = arith.addf %83, %84 : vector<8x256xf32>
    %c3 = arith.constant 3 : index
    %c0_30 = arith.constant 0 : index
    %86 = vector.load %arg1[%c3, %c0_30] : memref<8x256xf32, #tpu.memory_space<vmem>>, vector<1x256xf32>
    %87 = vector.shape_cast %86 : vector<1x256xf32> to vector<1x256xf32>
    %88 = vector.broadcast %87 : vector<1x256xf32> to vector<4x256xf32>
    %c7 = arith.constant 7 : index
    %c0_31 = arith.constant 0 : index
    %89 = vector.load %arg1[%c7, %c0_31] : memref<8x256xf32, #tpu.memory_space<vmem>>, vector<1x256xf32>
    %90 = vector.shape_cast %89 : vector<1x256xf32> to vector<1x256xf32>
    %91 = vector.broadcast %90 : vector<1x256xf32> to vector<4x256xf32>
    %92 = tpu.concatenate %88, %91 in 0 : vector<4x256xf32>, vector<4x256xf32> -> vector<8x256xf32>
    %c3_32 = arith.constant 3 : index
    %c0_33 = arith.constant 0 : index
    %93 = vector.load %arg2[%c3_32, %c0_33] : memref<8x256xf32, #tpu.memory_space<vmem>>, vector<1x256xf32>
    %94 = vector.shape_cast %93 : vector<1x256xf32> to vector<1x256xf32>
    %95 = vector.broadcast %94 : vector<1x256xf32> to vector<4x256xf32>
    %c7_34 = arith.constant 7 : index
    %c0_35 = arith.constant 0 : index
    %96 = vector.load %arg2[%c7_34, %c0_35] : memref<8x256xf32, #tpu.memory_space<vmem>>, vector<1x256xf32>
    %97 = vector.shape_cast %96 : vector<1x256xf32> to vector<1x256xf32>
    %98 = vector.broadcast %97 : vector<1x256xf32> to vector<4x256xf32>
    %99 = tpu.concatenate %95, %98 in 0 : vector<4x256xf32>, vector<4x256xf32> -> vector<8x256xf32>
    %c12 = arith.constant 12 : index
    %c0_36 = arith.constant 0 : index
    %100 = vector.load %arg3[%c12, %c0_36] : memref<16x256xbf16, #tpu.memory_space<vmem>>, vector<4x256xbf16>
    %101 = arith.extf %100 : vector<4x256xbf16> to vector<4x256xf32>
    %102 = tpu.concatenate %101, %101 in 0 : vector<4x256xf32>, vector<4x256xf32> -> vector<8x256xf32>
    %c12_37 = arith.constant 12 : index
    %c0_38 = arith.constant 0 : index
    %103 = vector.load %arg4[%c12_37, %c0_38] : memref<16x256xbf16, #tpu.memory_space<vmem>>, vector<4x256xbf16>
    %104 = arith.extf %103 : vector<4x256xbf16> to vector<4x256xf32>
    %105 = tpu.concatenate %104, %104 in 0 : vector<4x256xf32>, vector<4x256xf32> -> vector<8x256xf32>
    %106 = arith.mulf %92, %102 : vector<8x256xf32>
    %107 = arith.addf %81, %106 : vector<8x256xf32>
    %108 = arith.mulf %99, %105 : vector<8x256xf32>
    %109 = arith.subf %107, %108 : vector<8x256xf32>
    %110 = arith.mulf %92, %105 : vector<8x256xf32>
    %111 = arith.addf %85, %110 : vector<8x256xf32>
    %112 = arith.mulf %99, %102 : vector<8x256xf32>
    %113 = arith.addf %111, %112 : vector<8x256xf32>
    %c0_39 = arith.constant 0 : index
    %c0_40 = arith.constant 0 : index
    %114 = vector.load %arg5[%c0_39, %c0_40] : memref<8x256xf32, #tpu.memory_space<vmem>>, vector<8x256xf32>
    tpu.vector_store %arg5[%c0_39, %c0_40], %109 {strides = array<i32>} : memref<8x256xf32, #tpu.memory_space<vmem>>, vector<8x256xf32>,
    %c0_41 = arith.constant 0 : index
    %c0_42 = arith.constant 0 : index
    %115 = vector.load %arg6[%c0_41, %c0_42] : memref<8x256xf32, #tpu.memory_space<vmem>>, vector<8x256xf32>
    tpu.vector_store %arg6[%c0_41, %c0_42], %113 {strides = array<i32>} : memref<8x256xf32, #tpu.memory_space<vmem>>, vector<8x256xf32>,
    return
  }
  func.func @transform_0(%arg0: i32) -> (i32, i32) {
    %c0_i32 = arith.constant 0 : i32
    %c0_i32_0 = arith.constant 0 : i32
    return %c0_i32, %arg0 : i32, i32
  }
  func.func @transform_1(%arg0: i32) -> (i32, i32) {
    %c0_i32 = arith.constant 0 : i32
    %c0_i32_0 = arith.constant 0 : i32
    return %c0_i32, %arg0 : i32, i32
  }
  func.func @transform_2(%arg0: i32) -> (i32, i32) {
    %c0_i32 = arith.constant 0 : i32
    %c0_i32_0 = arith.constant 0 : i32
    return %c0_i32, %arg0 : i32, i32
  }
  func.func @transform_3(%arg0: i32) -> (i32, i32) {
    %c0_i32 = arith.constant 0 : i32
    %c0_i32_0 = arith.constant 0 : i32
    return %c0_i32, %arg0 : i32, i32
  }
  func.func @transform_4(%arg0: i32) -> (i32, i32) {
    %c0_i32 = arith.constant 0 : i32
    %c0_i32_0 = arith.constant 0 : i32
    return %c0_i32, %arg0 : i32, i32
  }
  func.func @transform_5(%arg0: i32) -> (i32, i32) {
    %c0_i32 = arith.constant 0 : i32
    %c0_i32_0 = arith.constant 0 : i32
    return %c0_i32, %arg0 : i32, i32
  }
}

</mosaic_0001>

<llo_original>
// kernel: _lambda_.1
$region0: #{_lambda_.1}
  #allocation0 [shape = 'u32[]', space=smem, size = 0x4, offset = 0x4, fixed_abs, tag = 'smem constant byte address 0x4 - core index']
  #allocation1 [shape = 'u32[72,128]{1,0:T(1,128)}', space=vmem, size = 0x9000, scoped, tag = 'internal scratch']
  %s0 = inlined_call_operand.vmem [shape: f32[8,640], index: 0, kind: input, shape index: {}]
  %s1 = inlined_call_operand.vmem [shape: f32[8,640], index: 1, kind: input, shape index: {}]
  %s2 = inlined_call_operand.vmem [shape: bf16[16,640], index: 2, kind: input, shape index: {}]
  %s3 = inlined_call_operand.vmem [shape: bf16[16,640], index: 3, kind: input, shape index: {}]
  %s4 = inlined_call_operand.vmem [shape: f32[8,640], index: 4, kind: output, shape index: {0}]
  %s5 = inlined_call_operand.vmem [shape: f32[8,640], index: 5, kind: output, shape index: {1}]
  %6 = xla_tuple %s4, %s5
  %s7 = sld [smem:[#allocation0]]
  $region313: #{_lambda_.1} parent=0
    _
  %s9 = ssub.s32 1, %s7
  %s10 = scalar_select 0, %s9, %s7
  $region1: #{_lambda_.1} parent=0
    #allocation2 [shape = 'u8[16384]{0}', space=vmem, size = 0x4000, scoped, tag = 'input window, operand 2']
    #allocation3 [shape = 'u8[16384]{0}', space=vmem, size = 0x4000, scoped, tag = 'input window, operand 3']
    #allocation4 [shape = 'u8[16384]{0}', space=vmem, size = 0x4000, scoped, tag = 'output window, operand 0']
    #allocation5 [shape = 'u8[16384]{0}', space=vmem, size = 0x4000, scoped, tag = 'output window, operand 1']
    loop: start=0, step=1, limit=5
    $region2: #{_lambda_.1} parent=1 // loop_pre_header
      _
    $region3: #{_lambda_.1} parent=1 // loop_header
      %s12 = sphi 0, %s16
      %p13 = scmp.ge.s32.totalorder %s12, 5
      %s22 = sphi 0, %s24
      %s25 = sphi 0, %s22
      %s26 = sphi 0, %s25
      %s42 = sphi 0, %s26
      %s48 = sphi 0, %s50
      %s51 = sphi 0, %s48
      %s52 = sphi 0, %s51
      %s68 = sphi 0, %s52
      %s74 = sphi 0, %s76
      %s77 = sphi 0, %s74
      %s78 = sphi 0, %s77
      %s94 = sphi 0, %s78
      %s100 = sphi 0, %s102
      %s103 = sphi 0, %s100
      %s104 = sphi 0, %s103
      %s120 = sphi 0, %s104
      %s126 = sphi 0, %s128
      %s129 = sphi 0, %s126
      %s130 = sphi 0, %s129
      %s146 = sphi 0, %s130
      %s152 = sphi 0, %s154
      %s155 = sphi 0, %s152
      %s156 = sphi 0, %s155
      %s172 = sphi 0, %s156
    $region4: #{_lambda_.1} parent=1 // loop_header_branch
      %15 = sbr.rel (%p13) target = $region8
    $region5: #{_lambda_.1} parent=1 // loop_body
      %s17 = ssub.s32 %s12, 1
      %s18 = ssub.s32 %s12, 2
      %s19 = sadd.s32 %s12, 1
      %s20 = ssub.s32 %s12, %s19
      %p21 = scmp.eq.s32.totalorder %s20, 0
      %s23 = sadd.s32 %s22, 1
      %s24 = scalar_select %p21, %s22, %s23
      %p27 = pneg %p21
      %p28 = scmp.eq.s32.totalorder %s12, 2
      %p29 = por %p27, %p28
      %p30 = scmp.ne.s32.totalorder %s22, %s25
      %p31 = scmp.eq.s32.totalorder %s12, 0
      %p32 = por %p30, %p31
      %p33 = scmp.ne.s32.totalorder %s22, %s25
      %p34 = scmp.eq.s32.totalorder %s17, 2
      %p35 = por %p33, %p34
      %p36 = scmp.ne.s32.totalorder %s25, %s26
      %p37 = scmp.eq.s32.totalorder %s17, 0
      %p38 = por %p36, %p37
      %p39 = scmp.ne.s32.totalorder %s25, %s26
      %p40 = scmp.eq.s32.totalorder %s18, 2
      %p41 = por %p39, %p40
      %p43 = scmp.ne.s32.totalorder %s26, %s42
      %p44 = scmp.eq.s32.totalorder %s18, 0
      %p45 = por %p43, %p44
      %s46 = ssub.s32 %s12, %s19
      %p47 = scmp.eq.s32.totalorder %s46, 0
      %s49 = sadd.s32 %s48, 1
      %s50 = scalar_select %p47, %s48, %s49
      %p53 = pneg %p47
      %p54 = scmp.eq.s32.totalorder %s12, 2
      %p55 = por %p53, %p54
      %p56 = scmp.ne.s32.totalorder %s48, %s51
      %p57 = scmp.eq.s32.totalorder %s12, 0
      %p58 = por %p56, %p57
      %p59 = scmp.ne.s32.totalorder %s48, %s51
      %p60 = scmp.eq.s32.totalorder %s17, 2
      %p61 = por %p59, %p60
      %p62 = scmp.ne.s32.totalorder %s51, %s52
      %p63 = scmp.eq.s32.totalorder %s17, 0
      %p64 = por %p62, %p63
      %p65 = scmp.ne.s32.totalorder %s51, %s52
      %p66 = scmp.eq.s32.totalorder %s18, 2
      %p67 = por %p65, %p66
      %p69 = scmp.ne.s32.totalorder %s52, %s68
      %p70 = scmp.eq.s32.totalorder %s18, 0
      %p71 = por %p69, %p70
      %s72 = ssub.s32 %s12, %s19
      %p73 = scmp.eq.s32.totalorder %s72, 0
      %s75 = sadd.s32 %s74, 1
      %s76 = scalar_select %p73, %s74, %s75
      %p79 = pneg %p73
      %p80 = scmp.eq.s32.totalorder %s12, 2
      %p81 = por %p79, %p80
      %p82 = scmp.ne.s32.totalorder %s74, %s77
      %p83 = scmp.eq.s32.totalorder %s12, 0
      %p84 = por %p82, %p83
      %p85 = scmp.ne.s32.totalorder %s74, %s77
      %p86 = scmp.eq.s32.totalorder %s17, 2
      %p87 = por %p85, %p86
      %p88 = scmp.ne.s32.totalorder %s77, %s78
      %p89 = scmp.eq.s32.totalorder %s17, 0
      %p90 = por %p88, %p89
      %p91 = scmp.ne.s32.totalorder %s77, %s78
      %p92 = scmp.eq.s32.totalorder %s18, 2
      %p93 = por %p91, %p92
      %p95 = scmp.ne.s32.totalorder %s78, %s94
      %p96 = scmp.eq.s32.totalorder %s18, 0
      %p97 = por %p95, %p96
      %s98 = ssub.s32 %s12, %s19
      %p99 = scmp.eq.s32.totalorder %s98, 0
      %s101 = sadd.s32 %s100, 1
      %s102 = scalar_select %p99, %s100, %s101
      %p105 = pneg %p99
      %p106 = scmp.eq.s32.totalorder %s12, 2
      %p107 = por %p105, %p106
      %p108 = scmp.ne.s32.totalorder %s100, %s103
      %p109 = scmp.eq.s32.totalorder %s12, 0
      %p110 = por %p108, %p109
      %p111 = scmp.ne.s32.totalorder %s100, %s103
      %p112 = scmp.eq.s32.totalorder %s17, 2
      %p113 = por %p111, %p112
      %p114 = scmp.ne.s32.totalorder %s103, %s104
      %p115 = scmp.eq.s32.totalorder %s17, 0
      %p116 = por %p114, %p115
      %p117 = scmp.ne.s32.totalorder %s103, %s104
      %p118 = scmp.eq.s32.totalorder %s18, 2
      %p119 = por %p117, %p118
      %p121 = scmp.ne.s32.totalorder %s104, %s120
      %p122 = scmp.eq.s32.totalorder %s18, 0
      %p123 = por %p121, %p122
      %s124 = ssub.s32 %s12, %s19
      %p125 = scmp.eq.s32.totalorder %s124, 0
      %s127 = sadd.s32 %s126, 1
      %s128 = scalar_select %p125, %s126, %s127
      %p131 = pneg %p125
      %p132 = scmp.eq.s32.totalorder %s12, 2
      %p133 = por %p131, %p132
      %p134 = scmp.ne.s32.totalorder %s126, %s129
      %p135 = scmp.eq.s32.totalorder %s12, 0
      %p136 = por %p134, %p135
      %p137 = scmp.ne.s32.totalorder %s126, %s129
      %p138 = scmp.eq.s32.totalorder %s17, 2
      %p139 = por %p137, %p138
      %p140 = scmp.ne.s32.totalorder %s129, %s130
      %p141 = scmp.eq.s32.totalorder %s17, 0
      %p142 = por %p140, %p141
      %p143 = scmp.ne.s32.totalorder %s129, %s130
      %p144 = scmp.eq.s32.totalorder %s18, 2
      %p145 = por %p143, %p144
      %p147 = scmp.ne.s32.totalorder %s130, %s146
      %p148 = scmp.eq.s32.totalorder %s18, 0
      %p149 = por %p147, %p148
      %s150 = ssub.s32 %s12, %s19
      %p151 = scmp.eq.s32.totalorder %s150, 0
      %s153 = sadd.s32 %s152, 1
      %s154 = scalar_select %p151, %s152, %s153
      %p157 = pneg %p151
      %p158 = scmp.eq.s32.totalorder %s12, 2
      %p159 = por %p157, %p158
      %p160 = scmp.ne.s32.totalorder %s152, %s155
      %p161 = scmp.eq.s32.totalorder %s12, 0
      %p162 = por %p160, %p161
      %p163 = scmp.ne.s32.totalorder %s152, %s155
      %p164 = scmp.eq.s32.totalorder %s17, 2
      %p165 = por %p163, %p164
      %p166 = scmp.ne.s32.totalorder %s155, %s156
      %p167 = scmp.eq.s32.totalorder %s17, 0
      %p168 = por %p166, %p167
      %p169 = scmp.ne.s32.totalorder %s155, %s156
      %p170 = scmp.eq.s32.totalorder %s18, 2
      %p171 = por %p169, %p170
      %p173 = scmp.ne.s32.totalorder %s156, %s172
      %p174 = scmp.eq.s32.totalorder %s18, 0
      %p175 = por %p173, %p174
      %p176 = scmp.le.s32.totalorder 1, %s12
      %p177 = scmp.lt.s32.totalorder %s12, 4
      %p178 = pnand %p176, %p177
      %p179 = pneg %p178
      // Predicated region
      $region9: #{_lambda_.1} parent=5 // pred_check
        _
      $region10: #{_lambda_.1} parent=5 // pred_check_branch
        %181 = sbr.rel (%p178) target = $region12
      $region11: #{_lambda_.1} parent=5 // pred_region
        %s182 = ssub.s32 %s12, 1
      $region12: #{_lambda_.1} parent=5 // pred_fallthru
        _
      %p183 = scmp.lt.s32.totalorder %s12, 3
      // Predicated region
      $region13: #{_lambda_.1} parent=5 // pred_check
        %p184 = pneg %p183
      $region14: #{_lambda_.1} parent=5 // pred_check_branch
        %186 = sbr.rel (%p184) target = $region16
      $region15: #{_lambda_.1} parent=5 // pred_region
        // Predicated region
        $region17: #{_lambda_.1} parent=15 // pred_check
          %p187 = pneg %p32
        $region18: #{_lambda_.1} parent=15 // pred_check_branch
          %189 = sbr.rel (%p187) target = $region20
        $region19: #{_lambda_.1} parent=15 // pred_region
          %s190 = smul.u32 2, %s12
          %s191 = ssub.s32 5, %s190
          %p192 = scmp.lt.s32.totalorder %s191, 2
          %s193 = scalar_select %p192, %s191, 2
          %s194 = smul.u32 8, %s193
          %p195 = scmp.lt.s32.totalorder %s190, 4
          %s196 = scalar_select %p195, %s190, 4
          %s197 = smul.addr %s196, 8
          %s198 = scalar_lea.vmem %s0, %s197
          %s199 = smul.u32 2, %s12
          %s200 = ssub.s32 5, %s199
          %p201 = scmp.lt.s32.totalorder %s200, 2
          %s202 = scalar_select %p201, %s200, 2
          %s203 = smul.u32 8, %s202
        $region20: #{_lambda_.1} parent=15 // pred_fallthru
          _
        // Predicated region
        $region21: #{_lambda_.1} parent=15 // pred_check
          %p204 = pneg %p58
        $region22: #{_lambda_.1} parent=15 // pred_check_branch
          %206 = sbr.rel (%p204) target = $region24
        $region23: #{_lambda_.1} parent=15 // pred_region
          %s207 = smul.u32 2, %s12
          %s208 = ssub.s32 5, %s207
          %p209 = scmp.lt.s32.totalorder %s208, 2
          %s210 = scalar_select %p209, %s208, 2
          %s211 = smul.u32 8, %s210
          %p212 = scmp.lt.s32.totalorder %s207, 4
          %s213 = scalar_select %p212, %s207, 4
          %s214 = smul.addr %s213, 8
          %s215 = scalar_lea.vmem %s1, %s214
          %s216 = smul.u32 2, %s12
          %s217 = ssub.s32 5, %s216
          %p218 = scmp.lt.s32.totalorder %s217, 2
          %s219 = scalar_select %p218, %s217, 2
          %s220 = smul.u32 8, %s219
        $region24: #{_lambda_.1} parent=15 // pred_fallthru
          _
        // Predicated region
        $region25: #{_lambda_.1} parent=15 // pred_check
          %p221 = pneg %p84
        $region26: #{_lambda_.1} parent=15 // pred_check_branch
          %223 = sbr.rel (%p221) target = $region28
        $region27: #{_lambda_.1} parent=15 // pred_region
          %s224 = sand.u32 %s74, 1
          %s225 = sand.u32 %s74, 1
          %s226 = smul.addr %s225, 16
          %s227 = scalar_lea.vmem [#allocation2], %s226
          %s228 = smul.u32 2, %s12
          %s229 = ssub.s32 5, %s228
          %p230 = scmp.lt.s32.totalorder %s229, 2
          %s231 = scalar_select %p230, %s229, 2
          %s232 = smul.u32 8, %s231
          %p233 = scmp.ne.s32.totalorder 0, %s232
          %s234 = smul.addr %s228, 4
          %s235 = scalar_lea.vmem %s2, %s234
          %s236 = smul.u32 %s231, 4
          // Predicated region
          $region29: #{_lambda_.1} parent=27 // pred_check
            %p237 = pneg %p233
          $region30: #{_lambda_.1} parent=27 // pred_check_branch
            %239 = sbr.rel (%p237) target = $region32
          $region31: #{_lambda_.1} parent=27 // pred_region
            %p240 = scmp.lt.u32.totalorder %s236, 8
            %p241 = pneg %p240
            // Predicated region
            $region33: #{_lambda_.1} parent=31 // pred_check
              _
            $region34: #{_lambda_.1} parent=31 // pred_check_branch
              %243 = sbr.rel (%p240) target = $region36
            $region35: #{_lambda_.1} parent=31 // pred_region
              %s261 = sand.u32 %s236, 7
              %p262 = scmp.eq.s32.totalorder %s261, 0
              // Predicated region
              $region48: #{_lambda_.1} parent=35 // pred_check
                %p263 = pneg %p262
              $region49: #{_lambda_.1} parent=35 // pred_check_branch
                %265 = sbr.rel (%p263) target = $region51
              $region50: #{_lambda_.1} parent=35 // pred_region
                %s266 = sshrl.u32 %s236, 3
                %s267 = sshrl.u32 %s266, 4
                // While loop
                $region52: #{_lambda_.1} parent=50 // loop_pre_header
                  _
                $region53: #{_lambda_.1} parent=50 // loop_header
                  %s269 = sphi 0, %s271
                  %p270 = scmp.ge.s32.totalorder %s269, %s267
                  %s274 = sphi 0, %s343
                  %s275 = sphi %s235, %s346
                  %s276 = sphi %s227, %s347
                $region54: #{_lambda_.1} parent=50 // loop_header_branch
                  %273 = sbr.rel (%p270) target = $region58
                $region55: #{_lambda_.1} parent=50 // loop_body
                  %v277 = vld [vmem:[%s275] sm:$0xff]
                  %278 = vst [vmem:[%s276] sm:$0xff] %v277
                  %v279 = vld [vmem:[%s275 + $0x8] sm:$0xff]
                  %280 = vst [vmem:[%s276 + $0x8] sm:$0xff] %v279
                  %v281 = vld [vmem:[%s275 + $0x10] sm:$0xff]
                  %282 = vst [vmem:[%s276 + $0x10] sm:$0xff] %v281
                  %v283 = vld [vmem:[%s275 + $0x18] sm:$0xff]
                  %284 = vst [vmem:[%s276 + $0x18] sm:$0xff] %v283
                  %v285 = vld [vmem:[%s275 + $0x20] sm:$0xff]
                  %286 = vst [vmem:[%s276 + $0x20] sm:$0xff] %v285
                  %v287 = vld [vmem:[%s275 + $0x28] sm:$0xff]
                  %288 = vst [vmem:[%s276 + $0x28] sm:$0xff] %v287
                  %v289 = vld [vmem:[%s275 + $0x30] sm:$0xff]
                  %290 = vst [vmem:[%s276 + $0x30] sm:$0xff] %v289
                  %v291 = vld [vmem:[%s275 + $0x38] sm:$0xff]
                  %292 = vst [vmem:[%s276 + $0x38] sm:$0xff] %v291
                  %v293 = vld [vmem:[%s275 + $0x40] sm:$0xff]
                  %294 = vst [vmem:[%s276 + $0x40] sm:$0xff] %v293
                  %v295 = vld [vmem:[%s275 + $0x48] sm:$0xff]
                  %296 = vst [vmem:[%s276 + $0x48] sm:$0xff] %v295
                  %v297 = vld [vmem:[%s275 + $0x50] sm:$0xff]
                  %298 = vst [vmem:[%s276 + $0x50] sm:$0xff] %v297
                  %v299 = vld [vmem:[%s275 + $0x58] sm:$0xff]
                  %300 = vst [vmem:[%s276 + $0x58] sm:$0xff] %v299
                  %v301 = vld [vmem:[%s275 + $0x60] sm:$0xff]
                  %302 = vst [vmem:[%s276 + $0x60] sm:$0xff] %v301
                  %v303 = vld [vmem:[%s275 + $0x68] sm:$0xff]
                  %304 = vst [vmem:[%s276 + $0x68] sm:$0xff] %v303
                  %v305 = vld [vmem:[%s275 + $0x70] sm:$0xff]
                  %306 = vst [vmem:[%s276 + $0x70] sm:$0xff] %v305
                  %v307 = vld [vmem:[%s275 + $0x78] sm:$0xff]
                  %308 = vst [vmem:[%s276 + $0x78] sm:$0xff] %v307
                  %v309 = vld [vmem:[%s275 + $0x14] sm:$0xff]
                  %310 = vst [vmem:[%s276 + $0x8] sm:$0xff] %v309
                  %v311 = vld [vmem:[%s275 + $0x1c] sm:$0xff]
                  %312 = vst [vmem:[%s276 + $0x10] sm:$0xff] %v311
                  %v313 = vld [vmem:[%s275 + $0x24] sm:$0xff]
                  %314 = vst [vmem:[%s276 + $0x18] sm:$0xff] %v313
                  %v315 = vld [vmem:[%s275 + $0x2c] sm:$0xff]
                  %316 = vst [vmem:[%s276 + $0x20] sm:$0xff] %v315
                  %v317 = vld [vmem:[%s275 + $0x34] sm:$0xff]
                  %318 = vst [vmem:[%s276 + $0x28] sm:$0xff] %v317
                  %v319 = vld [vmem:[%s275 + $0x3c] sm:$0xff]
                  %320 = vst [vmem:[%s276 + $0x30] sm:$0xff] %v319
                  %v321 = vld [vmem:[%s275 + $0x44] sm:$0xff]
                  %322 = vst [vmem:[%s276 + $0x38] sm:$0xff] %v321
                  %v323 = vld [vmem:[%s275 + $0x4c] sm:$0xff]
                  %324 = vst [vmem:[%s276 + $0x40] sm:$0xff] %v323
                  %v325 = vld [vmem:[%s275 + $0x54] sm:$0xff]
                  %326 = vst [vmem:[%s276 + $0x48] sm:$0xff] %v325
                  %v327 = vld [vmem:[%s275 + $0x5c] sm:$0xff]
                  %328 = vst [vmem:[%s276 + $0x50] sm:$0xff] %v327
                  %v329 = vld [vmem:[%s275 + $0x64] sm:$0xff]
                  %330 = vst [vmem:[%s276 + $0x58] sm:$0xff] %v329
                  %v331 = vld [vmem:[%s275 + $0x6c] sm:$0xff]
                  %332 = vst [vmem:[%s276 + $0x60] sm:$0xff] %v331
                  %v333 = vld [vmem:[%s275 + $0x74] sm:$0xff]
                  %334 = vst [vmem:[%s276 + $0x68] sm:$0xff] %v333
                  %v335 = vld [vmem:[%s275 + $0x7c] sm:$0xff]
                  %336 = vst [vmem:[%s276 + $0x70] sm:$0xff] %v335
                  %v337 = vld [vmem:[%s275 + $0x84] sm:$0xff]
                  %338 = vst [vmem:[%s276 + $0x78] sm:$0xff] %v337
                  %v339 = vld [vmem:[%s275 + $0x8c] sm:$0xff]
                  %340 = vst [vmem:[%s276 + $0x80] sm:$0xff] %v339
                  %s341 = sadd.s32 1, %s274
                  %p342 = scmp.ge.s32.totalorder %s341, %s267
                  %s343 = scalar_select %p342, 0, %s341
                  %s344 = smul.u32 %s343, 128
                  %s345 = smul.u32 %s343, 128
                  %s346 = scalar_lea.vmem %s235, %s344
                  %s347 = scalar_lea.vmem %s227, %s345 [#allocation2]
                $region56: #{_lambda_.1} parent=50 // loop_footer
                  %s271 = sadd.s32 %s269, 1
                $region57: #{_lambda_.1} parent=50 // loop_footer_branch
                  %268 = sbr.rel target = $region53
                $region58: #{_lambda_.1} parent=50 // loop_exit
                  _
                %s348 = sshrl.u32 %s266, 4
                %s349 = sand.u32 %s266, 15
                %s350 = smul.u32 %s348, 16
                %s351 = smul.u32 8, %s350
                %s352 = scalar_lea.vmem %s235, %s351
                %s353 = smul.u32 8, %s350
                %s354 = scalar_lea.vmem %s227, %s353 [#allocation2]
                // While loop
                $region59: #{_lambda_.1} parent=50 // loop_pre_header
                  _
                $region60: #{_lambda_.1} parent=50 // loop_header
                  %s356 = sphi 0, %s358
                  %p357 = scmp.ge.s32.totalorder %s356, %s349
                  %s361 = sphi 0, %s370
                  %s362 = sphi %s352, %s373
                  %s363 = sphi %s354, %s374
                $region61: #{_lambda_.1} parent=50 // loop_header_branch
                  %360 = sbr.rel (%p357) target = $region65
                $region62: #{_lambda_.1} parent=50 // loop_body
                  %v364 = vld [vmem:[%s362] sm:$0xff]
                  %365 = vst [vmem:[%s363] sm:$0xff] %v364
                  %v366 = vld [vmem:[%s362 + $0x14] sm:$0xff]
                  %367 = vst [vmem:[%s363 + $0x8] sm:$0xff] %v366
                  %s368 = sadd.s32 1, %s361
                  %p369 = scmp.ge.s32.totalorder %s368, %s349
                  %s370 = scalar_select %p369, 0, %s368
                  %s371 = smul.u32 %s370, 8
                  %s372 = smul.u32 %s370, 8
                  %s373 = scalar_lea.vmem %s352, %s371
                  %s374 = scalar_lea.vmem %s354, %s372 [#allocation2]
                $region63: #{_lambda_.1} parent=50 // loop_footer
                  %s358 = sadd.s32 %s356, 1
                $region64: #{_lambda_.1} parent=50 // loop_footer_branch
                  %355 = sbr.rel target = $region60
                $region65: #{_lambda_.1} parent=50 // loop_exit
                  _
              $region51: #{_lambda_.1} parent=35 // pred_fallthru
                _
              %p375 = pneg %p262
              // Predicated region
              $region66: #{_lambda_.1} parent=35 // pred_check
                _
              $region67: #{_lambda_.1} parent=35 // pred_check_branch
                %377 = sbr.rel (%p262) target = $region69
              $region68: #{_lambda_.1} parent=35 // pred_region
                %s378 = sand.u32 %s236, 7
                %s379 = ssub.s32 %s236, %s378
                %s380 = scalar_lea.vmem %s235, %s379
                %s381 = ssub.s32 %s236, %s378
                %s382 = scalar_lea.vmem %s227, %s381 [#allocation2]
                %s383 = sshrl.u32 %s236, 3
                %s384 = sshrl.u32 %s383, 4
                // While loop
                $region70: #{_lambda_.1} parent=68 // loop_pre_header
                  _
                $region71: #{_lambda_.1} parent=68 // loop_header
                  %s386 = sphi 0, %s388
                  %p387 = scmp.ge.s32.totalorder %s386, %s384
                  %s391 = sphi 0, %s460
                  %s392 = sphi %s235, %s463
                  %s393 = sphi %s227, %s464
                $region72: #{_lambda_.1} parent=68 // loop_header_branch
                  %390 = sbr.rel (%p387) target = $region76
                $region73: #{_lambda_.1} parent=68 // loop_body
                  %v394 = vld [vmem:[%s392] sm:$0xff]
                  %395 = vst [vmem:[%s393] sm:$0xff] %v394
                  %v396 = vld [vmem:[%s392 + $0x8] sm:$0xff]
                  %397 = vst [vmem:[%s393 + $0x8] sm:$0xff] %v396
                  %v398 = vld [vmem:[%s392 + $0x10] sm:$0xff]
                  %399 = vst [vmem:[%s393 + $0x10] sm:$0xff] %v398
                  %v400 = vld [vmem:[%s392 + $0x18] sm:$0xff]
                  %401 = vst [vmem:[%s393 + $0x18] sm:$0xff] %v400
                  %v402 = vld [vmem:[%s392 + $0x20] sm:$0xff]
                  %403 = vst [vmem:[%s393 + $0x20] sm:$0xff] %v402
                  %v404 = vld [vmem:[%s392 + $0x28] sm:$0xff]
                  %405 = vst [vmem:[%s393 + $0x28] sm:$0xff] %v404
                  %v406 = vld [vmem:[%s392 + $0x30] sm:$0xff]
                  %407 = vst [vmem:[%s393 + $0x30] sm:$0xff] %v406
                  %v408 = vld [vmem:[%s392 + $0x38] sm:$0xff]
                  %409 = vst [vmem:[%s393 + $0x38] sm:$0xff] %v408
                  %v410 = vld [vmem:[%s392 + $0x40] sm:$0xff]
                  %411 = vst [vmem:[%s393 + $0x40] sm:$0xff] %v410
                  %v412 = vld [vmem:[%s392 + $0x48] sm:$0xff]
                  %413 = vst [vmem:[%s393 + $0x48] sm:$0xff] %v412
                  %v414 = vld [vmem:[%s392 + $0x50] sm:$0xff]
                  %415 = vst [vmem:[%s393 + $0x50] sm:$0xff] %v414
                  %v416 = vld [vmem:[%s392 + $0x58] sm:$0xff]
                  %417 = vst [vmem:[%s393 + $0x58] sm:$0xff] %v416
                  %v418 = vld [vmem:[%s392 + $0x60] sm:$0xff]
                  %419 = vst [vmem:[%s393 + $0x60] sm:$0xff] %v418
                  %v420 = vld [vmem:[%s392 + $0x68] sm:$0xff]
                  %421 = vst [vmem:[%s393 + $0x68] sm:$0xff] %v420
                  %v422 = vld [vmem:[%s392 + $0x70] sm:$0xff]
                  %423 = vst [vmem:[%s393 + $0x70] sm:$0xff] %v422
                  %v424 = vld [vmem:[%s392 + $0x78] sm:$0xff]
                  %425 = vst [vmem:[%s393 + $0x78] sm:$0xff] %v424
                  %v426 = vld [vmem:[%s392 + $0x14] sm:$0xff]
                  %427 = vst [vmem:[%s393 + $0x8] sm:$0xff] %v426
                  %v428 = vld [vmem:[%s392 + $0x1c] sm:$0xff]
                  %429 = vst [vmem:[%s393 + $0x10] sm:$0xff] %v428
                  %v430 = vld [vmem:[%s392 + $0x24] sm:$0xff]
                  %431 = vst [vmem:[%s393 + $0x18] sm:$0xff] %v430
                  %v432 = vld [vmem:[%s392 + $0x2c] sm:$0xff]
                  %433 = vst [vmem:[%s393 + $0x20] sm:$0xff] %v432
                  %v434 = vld [vmem:[%s392 + $0x34] sm:$0xff]
                  %435 = vst [vmem:[%s393 + $0x28] sm:$0xff] %v434
                  %v436 = vld [vmem:[%s392 + $0x3c] sm:$0xff]
                  %437 = vst [vmem:[%s393 + $0x30] sm:$0xff] %v436
                  %v438 = vld [vmem:[%s392 + $0x44] sm:$0xff]
                  %439 = vst [vmem:[%s393 + $0x38] sm:$0xff] %v438
                  %v440 = vld [vmem:[%s392 + $0x4c] sm:$0xff]
                  %441 = vst [vmem:[%s393 + $0x40] sm:$0xff] %v440
                  %v442 = vld [vmem:[%s392 + $0x54] sm:$0xff]
                  %443 = vst [vmem:[%s393 + $0x48] sm:$0xff] %v442
                  %v444 = vld [vmem:[%s392 + $0x5c] sm:$0xff]
                  %445 = vst [vmem:[%s393 + $0x50] sm:$0xff] %v444
                  %v446 = vld [vmem:[%s392 + $0x64] sm:$0xff]
                  %447 = vst [vmem:[%s393 + $0x58] sm:$0xff] %v446
                  %v448 = vld [vmem:[%s392 + $0x6c] sm:$0xff]
                  %449 = vst [vmem:[%s393 + $0x60] sm:$0xff] %v448
                  %v450 = vld [vmem:[%s392 + $0x74] sm:$0xff]
                  %451 = vst [vmem:[%s393 + $0x68] sm:$0xff] %v450
                  %v452 = vld [vmem:[%s392 + $0x7c] sm:$0xff]
                  %453 = vst [vmem:[%s393 + $0x70] sm:$0xff] %v452
                  %v454 = vld [vmem:[%s392 + $0x84] sm:$0xff]
                  %455 = vst [vmem:[%s393 + $0x78] sm:$0xff] %v454
                  %v456 = vld [vmem:[%s392 + $0x8c] sm:$0xff]
                  %457 = vst [vmem:[%s393 + $0x80] sm:$0xff] %v456
                  %s458 = sadd.s32 1, %s391
                  %p459 = scmp.ge.s32.totalorder %s458, %s384
                  %s460 = scalar_select %p459, 0, %s458
                  %s461 = smul.u32 %s460, 128
                  %s462 = smul.u32 %s460, 128
                  %s463 = scalar_lea.vmem %s235, %s461
                  %s464 = scalar_lea.vmem %s227, %s462 [#allocation2]
                $region74: #{_lambda_.1} parent=68 // loop_footer
                  %s388 = sadd.s32 %s386, 1
                $region75: #{_lambda_.1} parent=68 // loop_footer_branch
                  %385 = sbr.rel target = $region71
                $region76: #{_lambda_.1} parent=68 // loop_exit
                  _
                %s465 = sshrl.u32 %s383, 4
                %s466 = sand.u32 %s383, 15
                %s467 = smul.u32 %s465, 16
                %s468 = smul.u32 8, %s467
                %s469 = scalar_lea.vmem %s235, %s468
                %s470 = smul.u32 8, %s467
                %s471 = scalar_lea.vmem %s227, %s470 [#allocation2]
                // While loop
                $region77: #{_lambda_.1} parent=68 // loop_pre_header
                  _
                $region78: #{_lambda_.1} parent=68 // loop_header
                  %s473 = sphi 0, %s475
                  %p474 = scmp.ge.s32.totalorder %s473, %s466
                  %s478 = sphi 0, %s487
                  %s479 = sphi %s469, %s490
                  %s480 = sphi %s471, %s491
                $region79: #{_lambda_.1} parent=68 // loop_header_branch
                  %477 = sbr.rel (%p474) target = $region83
                $region80: #{_lambda_.1} parent=68 // loop_body
                  %v481 = vld [vmem:[%s479] sm:$0xff]
                  %482 = vst [vmem:[%s480] sm:$0xff] %v481
                  %v483 = vld [vmem:[%s479 + $0x14] sm:$0xff]
                  %484 = vst [vmem:[%s480 + $0x8] sm:$0xff] %v483
                  %s485 = sadd.s32 1, %s478
                  %p486 = scmp.ge.s32.totalorder %s485, %s466
                  %s487 = scalar_select %p486, 0, %s485
                  %s488 = smul.u32 %s487, 8
                  %s489 = smul.u32 %s487, 8
                  %s490 = scalar_lea.vmem %s469, %s488
                  %s491 = scalar_lea.vmem %s471, %s489 [#allocation2]
                $region81: #{_lambda_.1} parent=68 // loop_footer
                  %s475 = sadd.s32 %s473, 1
                $region82: #{_lambda_.1} parent=68 // loop_footer_branch
                  %472 = sbr.rel target = $region78
                $region83: #{_lambda_.1} parent=68 // loop_exit
                  _
                %s492 = sshll.u32 1, %s378
                %s493 = ssub.s32 %s492, 1
                loop: start=0, step=1, limit=1
                $region84: #{_lambda_.1} parent=68 // loop_pre_header
                  _
                $region85: #{_lambda_.1} parent=68 // loop_header
                  %s495 = sphi 0, %s499
                  %p496 = scmp.ge.s32.totalorder %s495, 1
                  %s500 = sphi %s380, %s380
                  %s501 = sphi %s382, %s382
                $region86: #{_lambda_.1} parent=68 // loop_header_branch
                  %498 = sbr.rel (%p496) target = $region90
                $region87: #{_lambda_.1} parent=68 // loop_body
                  %v502 = vld [vmem:[%s500] sm:%s493]
                  %503 = vst [vmem:[%s501] sm:%s493] %v502
                  %v504 = vld [vmem:[%s500 + $0x14] sm:%s493]
                  %505 = vst [vmem:[%s501 + $0x8] sm:%s493] %v504
                $region88: #{_lambda_.1} parent=68 // loop_footer
                  %s499 = sadd.s32 1, %s495
                $region89: #{_lambda_.1} parent=68 // loop_footer_branch
                  %494 = sbr.rel target = $region85
                $region90: #{_lambda_.1} parent=68 // loop_exit
                  _
              $region69: #{_lambda_.1} parent=35 // pred_fallthru
                _
            $region36: #{_lambda_.1} parent=31 // pred_fallthru
              _
            // Predicated region
            $region37: #{_lambda_.1} parent=31 // pred_check
              %p244 = pneg %p240
            $region38: #{_lambda_.1} parent=31 // pred_check_branch
              %246 = sbr.rel (%p244) target = $region40
            $region39: #{_lambda_.1} parent=31 // pred_region
              %s247 = sshll.u32 1, %s236
              %s248 = ssub.s32 %s247, 1
              loop: start=0, step=1, limit=1
              $region41: #{_lambda_.1} parent=39 // loop_pre_header
                _
              $region42: #{_lambda_.1} parent=39 // loop_header
                %s250 = sphi 0, %s254
                %p251 = scmp.ge.s32.totalorder %s250, 1
                %s255 = sphi %s235, %s235
                %s256 = sphi %s227, %s227
              $region43: #{_lambda_.1} parent=39 // loop_header_branch
                %253 = sbr.rel (%p251) target = $region47
              $region44: #{_lambda_.1} parent=39 // loop_body
                %v257 = vld [vmem:[%s255] sm:%s248]
                %258 = vst [vmem:[%s256] sm:%s248] %v257
                %v259 = vld [vmem:[%s255 + $0x14] sm:%s248]
                %260 = vst [vmem:[%s256 + $0x8] sm:%s248] %v259
              $region45: #{_lambda_.1} parent=39 // loop_footer
                %s254 = sadd.s32 1, %s250
              $region46: #{_lambda_.1} parent=39 // loop_footer_branch
                %249 = sbr.rel target = $region42
              $region47: #{_lambda_.1} parent=39 // loop_exit
                _
            $region40: #{_lambda_.1} parent=31 // pred_fallthru
              _
          $region32: #{_lambda_.1} parent=27 // pred_fallthru
            _
          %506 = vnop
        $region28: #{_lambda_.1} parent=15 // pred_fallthru
          _
        // Predicated region
        $region91: #{_lambda_.1} parent=15 // pred_check
          %p507 = pneg %p110
        $region92: #{_lambda_.1} parent=15 // pred_check_branch
          %509 = sbr.rel (%p507) target = $region94
        $region93: #{_lambda_.1} parent=15 // pred_region
          %s510 = sand.u32 %s100, 1
          %s511 = sand.u32 %s100, 1
          %s512 = smul.addr %s511, 16
          %s513 = scalar_lea.vmem [#allocation3], %s512
          %s514 = smul.u32 2, %s12
          %s515 = ssub.s32 5, %s514
          %p516 = scmp.lt.s32.totalorder %s515, 2
          %s517 = scalar_select %p516, %s515, 2
          %s518 = smul.u32 8, %s517
          %p519 = scmp.ne.s32.totalorder 0, %s518
          %s520 = smul.addr %s514, 4
          %s521 = scalar_lea.vmem %s3, %s520
          %s522 = smul.u32 %s517, 4
          // Predicated region
          $region95: #{_lambda_.1} parent=93 // pred_check
            %p523 = pneg %p519
          $region96: #{_lambda_.1} parent=93 // pred_check_branch
            %525 = sbr.rel (%p523) target = $region98
          $region97: #{_lambda_.1} parent=93 // pred_region
            %p526 = scmp.lt.u32.totalorder %s522, 8
            %p527 = pneg %p526
            // Predicated region
            $region99: #{_lambda_.1} parent=97 // pred_check
              _
            $region100: #{_lambda_.1} parent=97 // pred_check_branch
              %529 = sbr.rel (%p526) target = $region102
            $region101: #{_lambda_.1} parent=97 // pred_region
              %s547 = sand.u32 %s522, 7
              %p548 = scmp.eq.s32.totalorder %s547, 0
              // Predicated region
              $region114: #{_lambda_.1} parent=101 // pred_check
                %p549 = pneg %p548
              $region115: #{_lambda_.1} parent=101 // pred_check_branch
                %551 = sbr.rel (%p549) target = $region117
              $region116: #{_lambda_.1} parent=101 // pred_region
                %s552 = sshrl.u32 %s522, 3
                %s553 = sshrl.u32 %s552, 4
                // While loop
                $region118: #{_lambda_.1} parent=116 // loop_pre_header
                  _
                $region119: #{_lambda_.1} parent=116 // loop_header
                  %s555 = sphi 0, %s557
                  %p556 = scmp.ge.s32.totalorder %s555, %s553
                  %s560 = sphi 0, %s629
                  %s561 = sphi %s521, %s632
                  %s562 = sphi %s513, %s633
                $region120: #{_lambda_.1} parent=116 // loop_header_branch
                  %559 = sbr.rel (%p556) target = $region124
                $region121: #{_lambda_.1} parent=116 // loop_body
                  %v563 = vld [vmem:[%s561] sm:$0xff]
                  %564 = vst [vmem:[%s562] sm:$0xff] %v563
                  %v565 = vld [vmem:[%s561 + $0x8] sm:$0xff]
                  %566 = vst [vmem:[%s562 + $0x8] sm:$0xff] %v565
                  %v567 = vld [vmem:[%s561 + $0x10] sm:$0xff]
                  %568 = vst [vmem:[%s562 + $0x10] sm:$0xff] %v567
                  %v569 = vld [vmem:[%s561 + $0x18] sm:$0xff]
                  %570 = vst [vmem:[%s562 + $0x18] sm:$0xff] %v569
                  %v571 = vld [vmem:[%s561 + $0x20] sm:$0xff]
                  %572 = vst [vmem:[%s562 + $0x20] sm:$0xff] %v571
                  %v573 = vld [vmem:[%s561 + $0x28] sm:$0xff]
                  %574 = vst [vmem:[%s562 + $0x28] sm:$0xff] %v573
                  %v575 = vld [vmem:[%s561 + $0x30] sm:$0xff]
                  %576 = vst [vmem:[%s562 + $0x30] sm:$0xff] %v575
                  %v577 = vld [vmem:[%s561 + $0x38] sm:$0xff]
                  %578 = vst [vmem:[%s562 + $0x38] sm:$0xff] %v577
                  %v579 = vld [vmem:[%s561 + $0x40] sm:$0xff]
                  %580 = vst [vmem:[%s562 + $0x40] sm:$0xff] %v579
                  %v581 = vld [vmem:[%s561 + $0x48] sm:$0xff]
                  %582 = vst [vmem:[%s562 + $0x48] sm:$0xff] %v581
                  %v583 = vld [vmem:[%s561 + $0x50] sm:$0xff]
                  %584 = vst [vmem:[%s562 + $0x50] sm:$0xff] %v583
                  %v585 = vld [vmem:[%s561 + $0x58] sm:$0xff]
                  %586 = vst [vmem:[%s562 + $0x58] sm:$0xff] %v585
                  %v587 = vld [vmem:[%s561 + $0x60] sm:$0xff]
                  %588 = vst [vmem:[%s562 + $0x60] sm:$0xff] %v587
                  %v589 = vld [vmem:[%s561 + $0x68] sm:$0xff]
                  %590 = vst [vmem:[%s562 + $0x68] sm:$0xff] %v589
                  %v591 = vld [vmem:[%s561 + $0x70] sm:$0xff]
                  %592 = vst [vmem:[%s562 + $0x70] sm:$0xff] %v591
                  %v593 = vld [vmem:[%s561 + $0x78] sm:$0xff]
                  %594 = vst [vmem:[%s562 + $0x78] sm:$0xff] %v593
                  %v595 = vld [vmem:[%s561 + $0x14] sm:$0xff]
                  %596 = vst [vmem:[%s562 + $0x8] sm:$0xff] %v595
                  %v597 = vld [vmem:[%s561 + $0x1c] sm:$0xff]
                  %598 = vst [vmem:[%s562 + $0x10] sm:$0xff] %v597
                  %v599 = vld [vmem:[%s561 + $0x24] sm:$0xff]
                  %600 = vst [vmem:[%s562 + $0x18] sm:$0xff] %v599
                  %v601 = vld [vmem:[%s561 + $0x2c] sm:$0xff]
                  %602 = vst [vmem:[%s562 + $0x20] sm:$0xff] %v601
                  %v603 = vld [vmem:[%s561 + $0x34] sm:$0xff]
                  %604 = vst [vmem:[%s562 + $0x28] sm:$0xff] %v603
                  %v605 = vld [vmem:[%s561 + $0x3c] sm:$0xff]
                  %606 = vst [vmem:[%s562 + $0x30] sm:$0xff] %v605
                  %v607 = vld [vmem:[%s561 + $0x44] sm:$0xff]
                  %608 = vst [vmem:[%s562 + $0x38] sm:$0xff] %v607
                  %v609 = vld [vmem:[%s561 + $0x4c] sm:$0xff]
                  %610 = vst [vmem:[%s562 + $0x40] sm:$0xff] %v609
                  %v611 = vld [vmem:[%s561 + $0x54] sm:$0xff]
                  %612 = vst [vmem:[%s562 + $0x48] sm:$0xff] %v611
                  %v613 = vld [vmem:[%s561 + $0x5c] sm:$0xff]
                  %614 = vst [vmem:[%s562 + $0x50] sm:$0xff] %v613
                  %v615 = vld [vmem:[%s561 + $0x64] sm:$0xff]
                  %616 = vst [vmem:[%s562 + $0x58] sm:$0xff] %v615
                  %v617 = vld [vmem:[%s561 + $0x6c] sm:$0xff]
                  %618 = vst [vmem:[%s562 + $0x60] sm:$0xff] %v617
                  %v619 = vld [vmem:[%s561 + $0x74] sm:$0xff]
                  %620 = vst [vmem:[%s562 + $0x68] sm:$0xff] %v619
                  %v621 = vld [vmem:[%s561 + $0x7c] sm:$0xff]
                  %622 = vst [vmem:[%s562 + $0x70] sm:$0xff] %v621
                  %v623 = vld [vmem:[%s561 + $0x84] sm:$0xff]
                  %624 = vst [vmem:[%s562 + $0x78] sm:$0xff] %v623
                  %v625 = vld [vmem:[%s561 + $0x8c] sm:$0xff]
                  %626 = vst [vmem:[%s562 + $0x80] sm:$0xff] %v625
                  %s627 = sadd.s32 1, %s560
                  %p628 = scmp.ge.s32.totalorder %s627, %s553
                  %s629 = scalar_select %p628, 0, %s627
                  %s630 = smul.u32 %s629, 128
                  %s631 = smul.u32 %s629, 128
                  %s632 = scalar_lea.vmem %s521, %s630
                  %s633 = scalar_lea.vmem %s513, %s631 [#allocation3]
                $region122: #{_lambda_.1} parent=116 // loop_footer
                  %s557 = sadd.s32 %s555, 1
                $region123: #{_lambda_.1} parent=116 // loop_footer_branch
                  %554 = sbr.rel target = $region119
                $region124: #{_lambda_.1} parent=116 // loop_exit
                  _
                %s634 = sshrl.u32 %s552, 4
                %s635 = sand.u32 %s552, 15
                %s636 = smul.u32 %s634, 16
                %s637 = smul.u32 8, %s636
                %s638 = scalar_lea.vmem %s521, %s637
                %s639 = smul.u32 8, %s636
                %s640 = scalar_lea.vmem %s513, %s639 [#allocation3]
                // While loop
                $region125: #{_lambda_.1} parent=116 // loop_pre_header
                  _
                $region126: #{_lambda_.1} parent=116 // loop_header
                  %s642 = sphi 0, %s644
                  %p643 = scmp.ge.s32.totalorder %s642, %s635
                  %s647 = sphi 0, %s656
                  %s648 = sphi %s638, %s659
                  %s649 = sphi %s640, %s660
                $region127: #{_lambda_.1} parent=116 // loop_header_branch
                  %646 = sbr.rel (%p643) target = $region131
                $region128: #{_lambda_.1} parent=116 // loop_body
                  %v650 = vld [vmem:[%s648] sm:$0xff]
                  %651 = vst [vmem:[%s649] sm:$0xff] %v650
                  %v652 = vld [vmem:[%s648 + $0x14] sm:$0xff]
                  %653 = vst [vmem:[%s649 + $0x8] sm:$0xff] %v652
                  %s654 = sadd.s32 1, %s647
                  %p655 = scmp.ge.s32.totalorder %s654, %s635
                  %s656 = scalar_select %p655, 0, %s654
                  %s657 = smul.u32 %s656, 8
                  %s658 = smul.u32 %s656, 8
                  %s659 = scalar_lea.vmem %s638, %s657
                  %s660 = scalar_lea.vmem %s640, %s658 [#allocation3]
                $region129: #{_lambda_.1} parent=116 // loop_footer
                  %s644 = sadd.s32 %s642, 1
                $region130: #{_lambda_.1} parent=116 // loop_footer_branch
                  %641 = sbr.rel target = $region126
                $region131: #{_lambda_.1} parent=116 // loop_exit
                  _
              $region117: #{_lambda_.1} parent=101 // pred_fallthru
                _
              %p661 = pneg %p548
              // Predicated region
              $region132: #{_lambda_.1} parent=101 // pred_check
                _
              $region133: #{_lambda_.1} parent=101 // pred_check_branch
                %663 = sbr.rel (%p548) target = $region135
              $region134: #{_lambda_.1} parent=101 // pred_region
                %s664 = sand.u32 %s522, 7
                %s665 = ssub.s32 %s522, %s664
                %s666 = scalar_lea.vmem %s521, %s665
                %s667 = ssub.s32 %s522, %s664
                %s668 = scalar_lea.vmem %s513, %s667 [#allocation3]
                %s669 = sshrl.u32 %s522, 3
                %s670 = sshrl.u32 %s669, 4
                // While loop
                $region136: #{_lambda_.1} parent=134 // loop_pre_header
                  _
                $region137: #{_lambda_.1} parent=134 // loop_header
                  %s672 = sphi 0, %s674
                  %p673 = scmp.ge.s32.totalorder %s672, %s670
                  %s677 = sphi 0, %s746
                  %s678 = sphi %s521, %s749
                  %s679 = sphi %s513, %s750
                $region138: #{_lambda_.1} parent=134 // loop_header_branch
                  %676 = sbr.rel (%p673) target = $region142
                $region139: #{_lambda_.1} parent=134 // loop_body
                  %v680 = vld [vmem:[%s678] sm:$0xff]
                  %681 = vst [vmem:[%s679] sm:$0xff] %v680
                  %v682 = vld [vmem:[%s678 + $0x8] sm:$0xff]
                  %683 = vst [vmem:[%s679 + $0x8] sm:$0xff] %v682
                  %v684 = vld [vmem:[%s678 + $0x10] sm:$0xff]
                  %685 = vst [vmem:[%s679 + $0x10] sm:$0xff] %v684
                  %v686 = vld [vmem:[%s678 + $0x18] sm:$0xff]
                  %687 = vst [vmem:[%s679 + $0x18] sm:$0xff] %v686
                  %v688 = vld [vmem:[%s678 + $0x20] sm:$0xff]
                  %689 = vst [vmem:[%s679 + $0x20] sm:$0xff] %v688
                  %v690 = vld [vmem:[%s678 + $0x28] sm:$0xff]
                  %691 = vst [vmem:[%s679 + $0x28] sm:$0xff] %v690
                  %v692 = vld [vmem:[%s678 + $0x30] sm:$0xff]
                  %693 = vst [vmem:[%s679 + $0x30] sm:$0xff] %v692
                  %v694 = vld [vmem:[%s678 + $0x38] sm:$0xff]
                  %695 = vst [vmem:[%s679 + $0x38] sm:$0xff] %v694
                  %v696 = vld [vmem:[%s678 + $0x40] sm:$0xff]
                  %697 = vst [vmem:[%s679 + $0x40] sm:$0xff] %v696
                  %v698 = vld [vmem:[%s678 + $0x48] sm:$0xff]
                  %699 = vst [vmem:[%s679 + $0x48] sm:$0xff] %v698
                  %v700 = vld [vmem:[%s678 + $0x50] sm:$0xff]
                  %701 = vst [vmem:[%s679 + $0x50] sm:$0xff] %v700
                  %v702 = vld [vmem:[%s678 + $0x58] sm:$0xff]
                  %703 = vst [vmem:[%s679 + $0x58] sm:$0xff] %v702
                  %v704 = vld [vmem:[%s678 + $0x60] sm:$0xff]
                  %705 = vst [vmem:[%s679 + $0x60] sm:$0xff] %v704
                  %v706 = vld [vmem:[%s678 + $0x68] sm:$0xff]
                  %707 = vst [vmem:[%s679 + $0x68] sm:$0xff] %v706
                  %v708 = vld [vmem:[%s678 + $0x70] sm:$0xff]
                  %709 = vst [vmem:[%s679 + $0x70] sm:$0xff] %v708
                  %v710 = vld [vmem:[%s678 + $0x78] sm:$0xff]
                  %711 = vst [vmem:[%s679 + $0x78] sm:$0xff] %v710
                  %v712 = vld [vmem:[%s678 + $0x14] sm:$0xff]
                  %713 = vst [vmem:[%s679 + $0x8] sm:$0xff] %v712
                  %v714 = vld [vmem:[%s678 + $0x1c] sm:$0xff]
                  %715 = vst [vmem:[%s679 + $0x10] sm:$0xff] %v714
                  %v716 = vld [vmem:[%s678 + $0x24] sm:$0xff]
                  %717 = vst [vmem:[%s679 + $0x18] sm:$0xff] %v716
                  %v718 = vld [vmem:[%s678 + $0x2c] sm:$0xff]
                  %719 = vst [vmem:[%s679 + $0x20] sm:$0xff] %v718
                  %v720 = vld [vmem:[%s678 + $0x34] sm:$0xff]
                  %721 = vst [vmem:[%s679 + $0x28] sm:$0xff] %v720
                  %v722 = vld [vmem:[%s678 + $0x3c] sm:$0xff]
                  %723 = vst [vmem:[%s679 + $0x30] sm:$0xff] %v722
                  %v724 = vld [vmem:[%s678 + $0x44] sm:$0xff]
                  %725 = vst [vmem:[%s679 + $0x38] sm:$0xff] %v724
                  %v726 = vld [vmem:[%s678 + $0x4c] sm:$0xff]
                  %727 = vst [vmem:[%s679 + $0x40] sm:$0xff] %v726
                  %v728 = vld [vmem:[%s678 + $0x54] sm:$0xff]
                  %729 = vst [vmem:[%s679 + $0x48] sm:$0xff] %v728
                  %v730 = vld [vmem:[%s678 + $0x5c] sm:$0xff]
                  %731 = vst [vmem:[%s679 + $0x50] sm:$0xff] %v730
                  %v732 = vld [vmem:[%s678 + $0x64] sm:$0xff]
                  %733 = vst [vmem:[%s679 + $0x58] sm:$0xff] %v732
                  %v734 = vld [vmem:[%s678 + $0x6c] sm:$0xff]
                  %735 = vst [vmem:[%s679 + $0x60] sm:$0xff] %v734
                  %v736 = vld [vmem:[%s678 + $0x74] sm:$0xff]
                  %737 = vst [vmem:[%s679 + $0x68] sm:$0xff] %v736
                  %v738 = vld [vmem:[%s678 + $0x7c] sm:$0xff]
                  %739 = vst [vmem:[%s679 + $0x70] sm:$0xff] %v738
                  %v740 = vld [vmem:[%s678 + $0x84] sm:$0xff]
                  %741 = vst [vmem:[%s679 + $0x78] sm:$0xff] %v740
                  %v742 = vld [vmem:[%s678 + $0x8c] sm:$0xff]
                  %743 = vst [vmem:[%s679 + $0x80] sm:$0xff] %v742
                  %s744 = sadd.s32 1, %s677
                  %p745 = scmp.ge.s32.totalorder %s744, %s670
                  %s746 = scalar_select %p745, 0, %s744
                  %s747 = smul.u32 %s746, 128
                  %s748 = smul.u32 %s746, 128
                  %s749 = scalar_lea.vmem %s521, %s747
                  %s750 = scalar_lea.vmem %s513, %s748 [#allocation3]
                $region140: #{_lambda_.1} parent=134 // loop_footer
                  %s674 = sadd.s32 %s672, 1
                $region141: #{_lambda_.1} parent=134 // loop_footer_branch
                  %671 = sbr.rel target = $region137
                $region142: #{_lambda_.1} parent=134 // loop_exit
                  _
                %s751 = sshrl.u32 %s669, 4
                %s752 = sand.u32 %s669, 15
                %s753 = smul.u32 %s751, 16
                %s754 = smul.u32 8, %s753
                %s755 = scalar_lea.vmem %s521, %s754
                %s756 = smul.u32 8, %s753
                %s757 = scalar_lea.vmem %s513, %s756 [#allocation3]
                // While loop
                $region143: #{_lambda_.1} parent=134 // loop_pre_header
                  _
                $region144: #{_lambda_.1} parent=134 // loop_header
                  %s759 = sphi 0, %s761
                  %p760 = scmp.ge.s32.totalorder %s759, %s752
                  %s764 = sphi 0, %s773
                  %s765 = sphi %s755, %s776
                  %s766 = sphi %s757, %s777
                $region145: #{_lambda_.1} parent=134 // loop_header_branch
                  %763 = sbr.rel (%p760) target = $region149
                $region146: #{_lambda_.1} parent=134 // loop_body
                  %v767 = vld [vmem:[%s765] sm:$0xff]
                  %768 = vst [vmem:[%s766] sm:$0xff] %v767
                  %v769 = vld [vmem:[%s765 + $0x14] sm:$0xff]
                  %770 = vst [vmem:[%s766 + $0x8] sm:$0xff] %v769
                  %s771 = sadd.s32 1, %s764
                  %p772 = scmp.ge.s32.totalorder %s771, %s752
                  %s773 = scalar_select %p772, 0, %s771
                  %s774 = smul.u32 %s773, 8
                  %s775 = smul.u32 %s773, 8
                  %s776 = scalar_lea.vmem %s755, %s774
                  %s777 = scalar_lea.vmem %s757, %s775 [#allocation3]
                $region147: #{_lambda_.1} parent=134 // loop_footer
                  %s761 = sadd.s32 %s759, 1
                $region148: #{_lambda_.1} parent=134 // loop_footer_branch
                  %758 = sbr.rel target = $region144
                $region149: #{_lambda_.1} parent=134 // loop_exit
                  _
                %s778 = sshll.u32 1, %s664
                %s779 = ssub.s32 %s778, 1
                loop: start=0, step=1, limit=1
                $region150: #{_lambda_.1} parent=134 // loop_pre_header
                  _
                $region151: #{_lambda_.1} parent=134 // loop_header
                  %s781 = sphi 0, %s785
                  %p782 = scmp.ge.s32.totalorder %s781, 1
                  %s786 = sphi %s666, %s666
                  %s787 = sphi %s668, %s668
                $region152: #{_lambda_.1} parent=134 // loop_header_branch
                  %784 = sbr.rel (%p782) target = $region156
                $region153: #{_lambda_.1} parent=134 // loop_body
                  %v788 = vld [vmem:[%s786] sm:%s779]
                  %789 = vst [vmem:[%s787] sm:%s779] %v788
                  %v790 = vld [vmem:[%s786 + $0x14] sm:%s779]
                  %791 = vst [vmem:[%s787 + $0x8] sm:%s779] %v790
                $region154: #{_lambda_.1} parent=134 // loop_footer
                  %s785 = sadd.s32 1, %s781
                $region155: #{_lambda_.1} parent=134 // loop_footer_branch
                  %780 = sbr.rel target = $region151
                $region156: #{_lambda_.1} parent=134 // loop_exit
                  _
              $region135: #{_lambda_.1} parent=101 // pred_fallthru
                _
            $region102: #{_lambda_.1} parent=97 // pred_fallthru
              _
            // Predicated region
            $region103: #{_lambda_.1} parent=97 // pred_check
              %p530 = pneg %p526
            $region104: #{_lambda_.1} parent=97 // pred_check_branch
              %532 = sbr.rel (%p530) target = $region106
            $region105: #{_lambda_.1} parent=97 // pred_region
              %s533 = sshll.u32 1, %s522
              %s534 = ssub.s32 %s533, 1
              loop: start=0, step=1, limit=1
              $region107: #{_lambda_.1} parent=105 // loop_pre_header
                _
              $region108: #{_lambda_.1} parent=105 // loop_header
                %s536 = sphi 0, %s540
                %p537 = scmp.ge.s32.totalorder %s536, 1
                %s541 = sphi %s521, %s521
                %s542 = sphi %s513, %s513
              $region109: #{_lambda_.1} parent=105 // loop_header_branch
                %539 = sbr.rel (%p537) target = $region113
              $region110: #{_lambda_.1} parent=105 // loop_body
                %v543 = vld [vmem:[%s541] sm:%s534]
                %544 = vst [vmem:[%s542] sm:%s534] %v543
                %v545 = vld [vmem:[%s541 + $0x14] sm:%s534]
                %546 = vst [vmem:[%s542 + $0x8] sm:%s534] %v545
              $region111: #{_lambda_.1} parent=105 // loop_footer
                %s540 = sadd.s32 1, %s536
              $region112: #{_lambda_.1} parent=105 // loop_footer_branch
                %535 = sbr.rel target = $region108
              $region113: #{_lambda_.1} parent=105 // loop_exit
                _
            $region106: #{_lambda_.1} parent=97 // pred_fallthru
              _
          $region98: #{_lambda_.1} parent=93 // pred_fallthru
            _
          %792 = vnop
        $region94: #{_lambda_.1} parent=15 // pred_fallthru
          _
      $region16: #{_lambda_.1} parent=5 // pred_fallthru
        _
      %p793 = scmp.le.s32.totalorder 1, %s12
      %p794 = scmp.lt.s32.totalorder %s12, 4
      %p795 = pnand %p793, %p794
      %p796 = pneg %p795
      // Predicated region
      $region157: #{_lambda_.1} parent=5 // pred_check
        _
      $region158: #{_lambda_.1} parent=5 // pred_check_branch
        %798 = sbr.rel (%p795) target = $region160
      $region159: #{_lambda_.1} parent=5 // pred_region
        %s799 = ssub.s32 %s12, 1
        %s800 = sand.u32 %s77, 1
        %s801 = sand.u32 %s77, 1
        %s802 = smul.addr %s801, 16
        %s803 = scalar_lea.vmem [#allocation2], %s802
        // Predicated region
        $region161: #{_lambda_.1} parent=159 // pred_check
          %p804 = pneg %p90
        $region162: #{_lambda_.1} parent=159 // pred_check_branch
          %806 = sbr.rel (%p804) target = $region164
        $region163: #{_lambda_.1} parent=159 // pred_region
          _
        $region164: #{_lambda_.1} parent=159 // pred_fallthru
          _
        %s807 = sand.u32 %s103, 1
        %s808 = sand.u32 %s103, 1
        %s809 = smul.addr %s808, 16
        %s810 = scalar_lea.vmem [#allocation3], %s809
        // Predicated region
        $region165: #{_lambda_.1} parent=159 // pred_check
          %p811 = pneg %p116
        $region166: #{_lambda_.1} parent=159 // pred_check_branch
          %813 = sbr.rel (%p811) target = $region168
        $region167: #{_lambda_.1} parent=159 // pred_region
          _
        $region168: #{_lambda_.1} parent=159 // pred_fallthru
          _
        %s814 = smul.u32 2, %s17
        %s815 = ssub.s32 5, %s814
        %p816 = scmp.lt.s32.totalorder %s815, 2
        %s817 = scalar_select %p816, %s815, 2
        %s818 = smul.u32 8, %s817
        %p819 = scmp.lt.s32.totalorder %s814, 4
        %s820 = scalar_select %p819, %s814, 4
        %s821 = smul.addr %s820, 8
        %s822 = scalar_lea.vmem %s0, %s821
        %p823 = pneg %p38
        %p824 = pneg %p35
        %s825 = smul.u32 2, %s17
        %s826 = ssub.s32 5, %s825
        %p827 = scmp.lt.s32.totalorder %s826, 2
        %s828 = scalar_select %p827, %s826, 2
        %s829 = smul.u32 8, %s828
        %p830 = scmp.lt.s32.totalorder %s825, 4
        %s831 = scalar_select %p830, %s825, 4
        %s832 = smul.addr %s831, 8
        %s833 = scalar_lea.vmem %s1, %s832
        %p834 = pneg %p64
        %p835 = pneg %p61
        %s836 = sand.u32 %s77, 1
        %s837 = sand.u32 %s77, 1
        %s838 = smul.addr %s837, 16
        %s839 = scalar_lea.vmem [#allocation2], %s838
        %p840 = pneg %p90
        %p841 = pneg %p87
        %s842 = sand.u32 %s103, 1
        %s843 = sand.u32 %s103, 1
        %s844 = smul.addr %s843, 16
        %s845 = scalar_lea.vmem [#allocation3], %s844
        %p846 = pneg %p116
        %p847 = pneg %p113
        %p848 = pneg %p142
        %p849 = pneg %p139
        %s850 = sand.u32 %s129, 1
        %s851 = sand.u32 %s129, 1
        %s852 = smul.addr %s851, 16
        %s853 = scalar_lea.vmem [#allocation4], %s852
        %p854 = pneg %p168
        %p855 = pneg %p165
        %s856 = sand.u32 %s155, 1
        %s857 = sand.u32 %s155, 1
        %s858 = smul.addr %s857, 16
        %s859 = scalar_lea.vmem [#allocation5], %s858
        %s860 = smul.u32 2, %s17
        %s861 = ssub.s32 5, %s860
        %p862 = scmp.lt.s32.totalorder %s861, 2
        %s863 = scalar_select %p862, %s861, 2
        %s864 = smul.u32 8, %s863
        %p865 = scmp.lt.s32.totalorder %s860, 4
        %s866 = scalar_select %p865, %s860, 4
        %s867 = smul.addr %s866, 8
        %s868 = scalar_lea.vmem %s0, %s867
        %s869 = smul.u32 2, %s17
        %s870 = ssub.s32 5, %s869
        %p871 = scmp.lt.s32.totalorder %s870, 2
        %s872 = scalar_select %p871, %s870, 2
        %s873 = smul.u32 8, %s872
        %s874 = smul.u32 2, %s17
        %s875 = ssub.s32 5, %s874
        %p876 = scmp.lt.s32.totalorder %s875, 2
        %s877 = scalar_select %p876, %s875, 2
        %s878 = smul.u32 8, %s877
        %p879 = scmp.lt.s32.totalorder %s874, 4
        %s880 = scalar_select %p879, %s874, 4
        %s881 = smul.addr %s880, 8
        %s882 = scalar_lea.vmem %s1, %s881
        %s883 = smul.u32 2, %s17
        %s884 = ssub.s32 5, %s883
        %p885 = scmp.lt.s32.totalorder %s884, 2
        %s886 = scalar_select %p885, %s884, 2
        %s887 = smul.u32 8, %s886
        %s888 = smul.u32 2, %s17
        %s889 = ssub.s32 5, %s888
        %p890 = scmp.lt.s32.totalorder %s889, 2
        %s891 = scalar_select %p890, %s889, 2
        %s892 = smul.u32 8, %s891
        %s893 = smul.u32 2, %s17
        %s894 = ssub.s32 5, %s893
        %p895 = scmp.lt.s32.totalorder %s894, 2
        %s896 = scalar_select %p895, %s894, 2
        %s897 = smul.u32 8, %s896
        %s898 = smul.u32 2, %s17
        %s899 = ssub.s32 5, %s898
        %p900 = scmp.lt.s32.totalorder %s899, 2
        %s901 = scalar_select %p900, %s899, 2
        %s902 = smul.u32 8, %s901
        %s903 = smul.u32 2, %s17
        %s904 = ssub.s32 5, %s903
        %p905 = scmp.lt.s32.totalorder %s904, 2
        %s906 = scalar_select %p905, %s904, 2
        %s907 = smul.u32 8, %s906
        %v908 = vld [vmem:[%s868] ss:$8 sm:$0x3]
        %v910 = vperm.slane %v908, 0
        %v911 = vperm.slane %v908, 1
        %s914 = scalar_lea.vmem %s868, 4
        %v915 = vld [vmem:[%s914] ss:$8 sm:$0x3]
        %v917 = vperm.slane %v915, 0
        %v918 = vperm.slane %v915, 1
        %vm921 = vcmask 1043456
        %v922 = vsel %vm921, %v910, %v917
        %v923 = vsel %vm921, %v911, %v918
        %v924 = vld [vmem:[%s882] ss:$8 sm:$0x3]
        %v926 = vperm.slane %v924, 0
        %v927 = vperm.slane %v924, 1
        %s930 = scalar_lea.vmem %s882, 4
        %v931 = vld [vmem:[%s930] ss:$8 sm:$0x3]
        %v933 = vperm.slane %v931, 0
        %v934 = vperm.slane %v931, 1
        %v937 = vsel %vm921, %v926, %v933
        %v938 = vsel %vm921, %v927, %v934
        %v939 = vld [vmem:[%s803] sm:$0x33]
        %v940 = vunpack.c.l.bf16 %v939
        %v941 = vunpack.c.h.bf16 %v939
        %v944 = vrot.slane %v940, 4
        %v945 = vrot.slane %v941, 4
        %v948 = vsel %vm921, %v940, %v944
        %v949 = vsel %vm921, %v941, %v945
        %v950 = vld [vmem:[%s810] sm:$0x33]
        %v951 = vunpack.c.l.bf16 %v950
        %v952 = vunpack.c.h.bf16 %v950
        %v955 = vrot.slane %v951, 4
        %v956 = vrot.slane %v952, 4
        %v959 = vsel %vm921, %v951, %v955
        %v960 = vsel %vm921, %v952, %v956
        %v961 = vmul.f32 %v922, %v948
        %v962 = vmul.f32 %v923, %v949
        %v963 = vadd.f32 %v961, 0.0
        %v964 = vadd.f32 %v962, 0.0
        %v965 = vmul.f32 %v937, %v959
        %v966 = vmul.f32 %v938, %v960
        %v967 = vsub.f32 %v963, %v965
        %v968 = vsub.f32 %v964, %v966
        %v969 = vmul.f32 %v922, %v959
        %v970 = vmul.f32 %v923, %v960
        %v971 = vadd.f32 %v969, 0.0
        %v972 = vadd.f32 %v970, 0.0
        %v973 = vmul.f32 %v937, %v948
        %v974 = vmul.f32 %v938, %v949
        %v975 = vadd.f32 %v971, %v973
        %v976 = vadd.f32 %v972, %v974
        %s977 = scalar_lea.vmem %s868, 1
        %v978 = vld [vmem:[%s977] ss:$8 sm:$0x3]
        %v980 = vperm.slane %v978, 0
        %v981 = vperm.slane %v978, 1
        %s984 = scalar_lea.vmem %s868, 5
        %v985 = vld [vmem:[%s984] ss:$8 sm:$0x3]
        %v987 = vperm.slane %v985, 0
        %v988 = vperm.slane %v985, 1
        %v991 = vsel %vm921, %v980, %v987
        %v992 = vsel %vm921, %v981, %v988
        %s993 = scalar_lea.vmem %s882, 1
        %v994 = vld [vmem:[%s993] ss:$8 sm:$0x3]
        %v996 = vperm.slane %v994, 0
        %v997 = vperm.slane %v994, 1
        %s1000 = scalar_lea.vmem %s882, 5
        %v1001 = vld [vmem:[%s1000] ss:$8 sm:$0x3]
        %v1003 = vperm.slane %v1001, 0
        %v1004 = vperm.slane %v1001, 1
        %v1007 = vsel %vm921, %v996, %v1003
        %v1008 = vsel %vm921, %v997, %v1004
        %v1009 = vld [vmem:[%s803] sm:$0xcc]
        %v1010 = vunpack.c.l.bf16 %v1009
        %v1011 = vunpack.c.h.bf16 %v1009
        %v1014 = vrot.slane %v1010, 4
        %v1015 = vrot.slane %v1011, 4
        %v1018 = vsel %vm921, %v1014, %v1010
        %v1019 = vsel %vm921, %v1015, %v1011
        %v1020 = vld [vmem:[%s810] sm:$0xcc]
        %v1021 = vunpack.c.l.bf16 %v1020
        %v1022 = vunpack.c.h.bf16 %v1020
        %v1025 = vrot.slane %v1021, 4
        %v1026 = vrot.slane %v1022, 4
        %v1029 = vsel %vm921, %v1025, %v1021
        %v1030 = vsel %vm921, %v1026, %v1022
        %v1031 = vmul.f32 %v991, %v1018
        %v1032 = vmul.f32 %v992, %v1019
        %v1033 = vadd.f32 %v967, %v1031
        %v1034 = vadd.f32 %v968, %v1032
        %v1035 = vmul.f32 %v1007, %v1029
        %v1036 = vmul.f32 %v1008, %v1030
        %v1037 = vsub.f32 %v1033, %v1035
        %v1038 = vsub.f32 %v1034, %v1036
        %v1039 = vmul.f32 %v991, %v1029
        %v1040 = vmul.f32 %v992, %v1030
        %v1041 = vadd.f32 %v975, %v1039
        %v1042 = vadd.f32 %v976, %v1040
        %v1043 = vmul.f32 %v1007, %v1018
        %v1044 = vmul.f32 %v1008, %v1019
        %v1045 = vadd.f32 %v1041, %v1043
        %v1046 = vadd.f32 %v1042, %v1044
        %s1047 = scalar_lea.vmem %s868, 2
        %v1048 = vld [vmem:[%s1047] ss:$8 sm:$0x3]
        %v1050 = vperm.slane %v1048, 0
        %v1051 = vperm.slane %v1048, 1
        %s1054 = scalar_lea.vmem %s868, 6
        %v1055 = vld [vmem:[%s1054] ss:$8 sm:$0x3]
        %v1057 = vperm.slane %v1055, 0
        %v1058 = vperm.slane %v1055, 1
        %v1061 = vsel %vm921, %v1050, %v1057
        %v1062 = vsel %vm921, %v1051, %v1058
        %s1063 = scalar_lea.vmem %s882, 2
        %v1064 = vld [vmem:[%s1063] ss:$8 sm:$0x3]
        %v1066 = vperm.slane %v1064, 0
        %v1067 = vperm.slane %v1064, 1
        %s1070 = scalar_lea.vmem %s882, 6
        %v1071 = vld [vmem:[%s1070] ss:$8 sm:$0x3]
        %v1073 = vperm.slane %v1071, 0
        %v1074 = vperm.slane %v1071, 1
        %v1077 = vsel %vm921, %v1066, %v1073
        %v1078 = vsel %vm921, %v1067, %v1074
        %v1079 = vld [vmem:[%s803 + $0x8] sm:$0x33]
        %v1080 = vunpack.c.l.bf16 %v1079
        %v1081 = vunpack.c.h.bf16 %v1079
        %v1084 = vrot.slane %v1080, 4
        %v1085 = vrot.slane %v1081, 4
        %v1088 = vsel %vm921, %v1080, %v1084
        %v1089 = vsel %vm921, %v1081, %v1085
        %v1090 = vld [vmem:[%s810 + $0x8] sm:$0x33]
        %v1091 = vunpack.c.l.bf16 %v1090
        %v1092 = vunpack.c.h.bf16 %v1090
        %v1095 = vrot.slane %v1091, 4
        %v1096 = vrot.slane %v1092, 4
        %v1099 = vsel %vm921, %v1091, %v1095
        %v1100 = vsel %vm921, %v1092, %v1096
        %v1101 = vmul.f32 %v1061, %v1088
        %v1102 = vmul.f32 %v1062, %v1089
        %v1103 = vadd.f32 %v1037, %v1101
        %v1104 = vadd.f32 %v1038, %v1102
        %v1105 = vmul.f32 %v1077, %v1099
        %v1106 = vmul.f32 %v1078, %v1100
        %v1107 = vsub.f32 %v1103, %v1105
        %v1108 = vsub.f32 %v1104, %v1106
        %v1109 = vmul.f32 %v1061, %v1099
        %v1110 = vmul.f32 %v1062, %v1100
        %v1111 = vadd.f32 %v1045, %v1109
        %v1112 = vadd.f32 %v1046, %v1110
        %v1113 = vmul.f32 %v1077, %v1088
        %v1114 = vmul.f32 %v1078, %v1089
        %v1115 = vadd.f32 %v1111, %v1113
        %v1116 = vadd.f32 %v1112, %v1114
        %s1117 = scalar_lea.vmem %s868, 3
        %v1118 = vld [vmem:[%s1117] ss:$8 sm:$0x3]
        %v1120 = vperm.slane %v1118, 0
        %v1121 = vperm.slane %v1118, 1
        %s1124 = scalar_lea.vmem %s868, 7
        %v1125 = vld [vmem:[%s1124] ss:$8 sm:$0x3]
        %v1127 = vperm.slane %v1125, 0
        %v1128 = vperm.slane %v1125, 1
        %v1131 = vsel %vm921, %v1120, %v1127
        %v1132 = vsel %vm921, %v1121, %v1128
        %s1133 = scalar_lea.vmem %s882, 3
        %v1134 = vld [vmem:[%s1133] ss:$8 sm:$0x3]
        %v1136 = vperm.slane %v1134, 0
        %v1137 = vperm.slane %v1134, 1
        %s1140 = scalar_lea.vmem %s882, 7
        %v1141 = vld [vmem:[%s1140] ss:$8 sm:$0x3]
        %v1143 = vperm.slane %v1141, 0
        %v1144 = vperm.slane %v1141, 1
        %v1147 = vsel %vm921, %v1136, %v1143
        %v1148 = vsel %vm921, %v1137, %v1144
        %v1149 = vld [vmem:[%s803 + $0x8] sm:$0xcc]
        %v1150 = vunpack.c.l.bf16 %v1149
        %v1151 = vunpack.c.h.bf16 %v1149
        %v1154 = vrot.slane %v1150, 4
        %v1155 = vrot.slane %v1151, 4
        %v1158 = vsel %vm921, %v1154, %v1150
        %v1159 = vsel %vm921, %v1155, %v1151
        %v1160 = vld [vmem:[%s810 + $0x8] sm:$0xcc]
        %v1161 = vunpack.c.l.bf16 %v1160
        %v1162 = vunpack.c.h.bf16 %v1160
        %v1165 = vrot.slane %v1161, 4
        %v1166 = vrot.slane %v1162, 4
        %v1169 = vsel %vm921, %v1165, %v1161
        %v1170 = vsel %vm921, %v1166, %v1162
        %v1171 = vmul.f32 %v1131, %v1158
        %v1172 = vmul.f32 %v1132, %v1159
        %v1173 = vadd.f32 %v1107, %v1171
        %v1174 = vadd.f32 %v1108, %v1172
        %v1175 = vmul.f32 %v1147, %v1169
        %v1176 = vmul.f32 %v1148, %v1170
        %v1177 = vsub.f32 %v1173, %v1175
        %v1178 = vsub.f32 %v1174, %v1176
        %v1179 = vmul.f32 %v1131, %v1169
        %v1180 = vmul.f32 %v1132, %v1170
        %v1181 = vadd.f32 %v1115, %v1179
        %v1182 = vadd.f32 %v1116, %v1180
        %v1183 = vmul.f32 %v1147, %v1158
        %v1184 = vmul.f32 %v1148, %v1159
        %v1185 = vadd.f32 %v1181, %v1183
        %v1186 = vadd.f32 %v1182, %v1184
        %1187 = vst [vmem:[%s853] sm:$0xff] %v1177
        %1188 = vst [vmem:[%s853 + $0x8] sm:$0xff] %v1178
        %1189 = vst [vmem:[%s859] sm:$0xff] %v1185
        %1190 = vst [vmem:[%s859 + $0x8] sm:$0xff] %v1186
        %s1191 = sand.u32 %s129, 1
        %s1192 = sand.u32 %s129, 1
        %s1193 = smul.addr %s1192, 16
        %s1194 = scalar_lea.vmem [#allocation4], %s1193
        %s1195 = sand.u32 %s155, 1
        %s1196 = sand.u32 %s155, 1
        %s1197 = smul.addr %s1196, 16
        %s1198 = scalar_lea.vmem [#allocation5], %s1197
        // Predicated region
        $region169: #{_lambda_.1} parent=159 // pred_check
          %p1199 = pneg %p139
        $region170: #{_lambda_.1} parent=159 // pred_check_branch
          %1201 = sbr.rel (%p1199) target = $region172
        $region171: #{_lambda_.1} parent=159 // pred_region
          %s1202 = smul.u32 2, %s17
          %s1203 = ssub.s32 5, %s1202
          %p1204 = scmp.lt.s32.totalorder %s1203, 2
          %s1205 = scalar_select %p1204, %s1203, 2
          %s1206 = smul.u32 8, %s1205
          %p1207 = scmp.ne.s32.totalorder 0, %s1206
          %s1208 = smul.addr %s1202, 8
          %s1209 = scalar_lea.vmem %s4, %s1208
          %s1210 = smul.u32 %s1205, 8
          // Predicated region
          $region173: #{_lambda_.1} parent=171 // pred_check
            %p1211 = pneg %p1207
          $region174: #{_lambda_.1} parent=171 // pred_check_branch
            %1213 = sbr.rel (%p1211) target = $region176
          $region175: #{_lambda_.1} parent=171 // pred_region
            %p1214 = scmp.lt.u32.totalorder %s1210, 8
            %p1215 = pneg %p1214
            // Predicated region
            $region177: #{_lambda_.1} parent=175 // pred_check
              _
            $region178: #{_lambda_.1} parent=175 // pred_check_branch
              %1217 = sbr.rel (%p1214) target = $region180
            $region179: #{_lambda_.1} parent=175 // pred_region
              %s1233 = sand.u32 %s1210, 7
              %p1234 = scmp.eq.s32.totalorder %s1233, 0
              // Predicated region
              $region192: #{_lambda_.1} parent=179 // pred_check
                %p1235 = pneg %p1234
              $region193: #{_lambda_.1} parent=179 // pred_check_branch
                %1237 = sbr.rel (%p1235) target = $region195
              $region194: #{_lambda_.1} parent=179 // pred_region
                %s1238 = sshrl.u32 %s1210, 3
                %s1239 = sshrl.u32 %s1238, 5
                // While loop
                $region196: #{_lambda_.1} parent=194 // loop_pre_header
                  _
                $region197: #{_lambda_.1} parent=194 // loop_header
                  %s1241 = sphi 0, %s1243
                  %p1242 = scmp.ge.s32.totalorder %s1241, %s1239
                  %s1246 = sphi 0, %s1315
                  %s1247 = sphi %s1194, %s1318
                  %s1248 = sphi %s1209, %s1319
                $region198: #{_lambda_.1} parent=194 // loop_header_branch
                  %1245 = sbr.rel (%p1242) target = $region202
                $region199: #{_lambda_.1} parent=194 // loop_body
                  %v1249 = vld [vmem:[%s1247] sm:$0xff]
                  %1250 = vst [vmem:[%s1248] sm:$0xff] %v1249
                  %v1251 = vld [vmem:[%s1247 + $0x8] sm:$0xff]
                  %1252 = vst [vmem:[%s1248 + $0x8] sm:$0xff] %v1251
                  %v1253 = vld [vmem:[%s1247 + $0x10] sm:$0xff]
                  %1254 = vst [vmem:[%s1248 + $0x10] sm:$0xff] %v1253
                  %v1255 = vld [vmem:[%s1247 + $0x18] sm:$0xff]
                  %1256 = vst [vmem:[%s1248 + $0x18] sm:$0xff] %v1255
                  %v1257 = vld [vmem:[%s1247 + $0x20] sm:$0xff]
                  %1258 = vst [vmem:[%s1248 + $0x20] sm:$0xff] %v1257
                  %v1259 = vld [vmem:[%s1247 + $0x28] sm:$0xff]
                  %1260 = vst [vmem:[%s1248 + $0x28] sm:$0xff] %v1259
                  %v1261 = vld [vmem:[%s1247 + $0x30] sm:$0xff]
                  %1262 = vst [vmem:[%s1248 + $0x30] sm:$0xff] %v1261
                  %v1263 = vld [vmem:[%s1247 + $0x38] sm:$0xff]
                  %1264 = vst [vmem:[%s1248 + $0x38] sm:$0xff] %v1263
                  %v1265 = vld [vmem:[%s1247 + $0x40] sm:$0xff]
                  %1266 = vst [vmem:[%s1248 + $0x40] sm:$0xff] %v1265
                  %v1267 = vld [vmem:[%s1247 + $0x48] sm:$0xff]
                  %1268 = vst [vmem:[%s1248 + $0x48] sm:$0xff] %v1267
                  %v1269 = vld [vmem:[%s1247 + $0x50] sm:$0xff]
                  %1270 = vst [vmem:[%s1248 + $0x50] sm:$0xff] %v1269
                  %v1271 = vld [vmem:[%s1247 + $0x58] sm:$0xff]
                  %1272 = vst [vmem:[%s1248 + $0x58] sm:$0xff] %v1271
                  %v1273 = vld [vmem:[%s1247 + $0x60] sm:$0xff]
                  %1274 = vst [vmem:[%s1248 + $0x60] sm:$0xff] %v1273
                  %v1275 = vld [vmem:[%s1247 + $0x68] sm:$0xff]
                  %1276 = vst [vmem:[%s1248 + $0x68] sm:$0xff] %v1275
                  %v1277 = vld [vmem:[%s1247 + $0x70] sm:$0xff]
                  %1278 = vst [vmem:[%s1248 + $0x70] sm:$0xff] %v1277
                  %v1279 = vld [vmem:[%s1247 + $0x78] sm:$0xff]
                  %1280 = vst [vmem:[%s1248 + $0x78] sm:$0xff] %v1279
                  %v1281 = vld [vmem:[%s1247 + $0x80] sm:$0xff]
                  %1282 = vst [vmem:[%s1248 + $0x80] sm:$0xff] %v1281
                  %v1283 = vld [vmem:[%s1247 + $0x88] sm:$0xff]
                  %1284 = vst [vmem:[%s1248 + $0x88] sm:$0xff] %v1283
                  %v1285 = vld [vmem:[%s1247 + $0x90] sm:$0xff]
                  %1286 = vst [vmem:[%s1248 + $0x90] sm:$0xff] %v1285
                  %v1287 = vld [vmem:[%s1247 + $0x98] sm:$0xff]
                  %1288 = vst [vmem:[%s1248 + $0x98] sm:$0xff] %v1287
                  %v1289 = vld [vmem:[%s1247 + $0xa0] sm:$0xff]
                  %1290 = vst [vmem:[%s1248 + $0xa0] sm:$0xff] %v1289
                  %v1291 = vld [vmem:[%s1247 + $0xa8] sm:$0xff]
                  %1292 = vst [vmem:[%s1248 + $0xa8] sm:$0xff] %v1291
                  %v1293 = vld [vmem:[%s1247 + $0xb0] sm:$0xff]
                  %1294 = vst [vmem:[%s1248 + $0xb0] sm:$0xff] %v1293
                  %v1295 = vld [vmem:[%s1247 + $0xb8] sm:$0xff]
                  %1296 = vst [vmem:[%s1248 + $0xb8] sm:$0xff] %v1295
                  %v1297 = vld [vmem:[%s1247 + $0xc0] sm:$0xff]
                  %1298 = vst [vmem:[%s1248 + $0xc0] sm:$0xff] %v1297
                  %v1299 = vld [vmem:[%s1247 + $0xc8] sm:$0xff]
                  %1300 = vst [vmem:[%s1248 + $0xc8] sm:$0xff] %v1299
                  %v1301 = vld [vmem:[%s1247 + $0xd0] sm:$0xff]
                  %1302 = vst [vmem:[%s1248 + $0xd0] sm:$0xff] %v1301
                  %v1303 = vld [vmem:[%s1247 + $0xd8] sm:$0xff]
                  %1304 = vst [vmem:[%s1248 + $0xd8] sm:$0xff] %v1303
                  %v1305 = vld [vmem:[%s1247 + $0xe0] sm:$0xff]
                  %1306 = vst [vmem:[%s1248 + $0xe0] sm:$0xff] %v1305
                  %v1307 = vld [vmem:[%s1247 + $0xe8] sm:$0xff]
                  %1308 = vst [vmem:[%s1248 + $0xe8] sm:$0xff] %v1307
                  %v1309 = vld [vmem:[%s1247 + $0xf0] sm:$0xff]
                  %1310 = vst [vmem:[%s1248 + $0xf0] sm:$0xff] %v1309
                  %v1311 = vld [vmem:[%s1247 + $0xf8] sm:$0xff]
                  %1312 = vst [vmem:[%s1248 + $0xf8] sm:$0xff] %v1311
                  %s1313 = sadd.s32 1, %s1246
                  %p1314 = scmp.ge.s32.totalorder %s1313, %s1239
                  %s1315 = scalar_select %p1314, 0, %s1313
                  %s1316 = smul.u32 %s1315, 256
                  %s1317 = smul.u32 %s1315, 256
                  %s1318 = scalar_lea.vmem %s1194, %s1316 [#allocation4]
                  %s1319 = scalar_lea.vmem %s1209, %s1317
                $region200: #{_lambda_.1} parent=194 // loop_footer
                  %s1243 = sadd.s32 %s1241, 1
                $region201: #{_lambda_.1} parent=194 // loop_footer_branch
                  %1240 = sbr.rel target = $region197
                $region202: #{_lambda_.1} parent=194 // loop_exit
                  _
                %s1320 = sshrl.u32 %s1238, 5
                %s1321 = sand.u32 %s1238, 31
                %s1322 = smul.u32 %s1320, 32
                %s1323 = smul.u32 8, %s1322
                %s1324 = scalar_lea.vmem %s1194, %s1323 [#allocation4]
                %s1325 = smul.u32 8, %s1322
                %s1326 = scalar_lea.vmem %s1209, %s1325
                // While loop
                $region203: #{_lambda_.1} parent=194 // loop_pre_header
                  _
                $region204: #{_lambda_.1} parent=194 // loop_header
                  %s1328 = sphi 0, %s1330
                  %p1329 = scmp.ge.s32.totalorder %s1328, %s1321
                  %s1333 = sphi 0, %s1340
                  %s1334 = sphi %s1324, %s1343
                  %s1335 = sphi %s1326, %s1344
                $region205: #{_lambda_.1} parent=194 // loop_header_branch
                  %1332 = sbr.rel (%p1329) target = $region209
                $region206: #{_lambda_.1} parent=194 // loop_body
                  %v1336 = vld [vmem:[%s1334] sm:$0xff]
                  %1337 = vst [vmem:[%s1335] sm:$0xff] %v1336
                  %s1338 = sadd.s32 1, %s1333
                  %p1339 = scmp.ge.s32.totalorder %s1338, %s1321
                  %s1340 = scalar_select %p1339, 0, %s1338
                  %s1341 = smul.u32 %s1340, 8
                  %s1342 = smul.u32 %s1340, 8
                  %s1343 = scalar_lea.vmem %s1324, %s1341 [#allocation4]
                  %s1344 = scalar_lea.vmem %s1326, %s1342
                $region207: #{_lambda_.1} parent=194 // loop_footer
                  %s1330 = sadd.s32 %s1328, 1
                $region208: #{_lambda_.1} parent=194 // loop_footer_branch
                  %1327 = sbr.rel target = $region204
                $region209: #{_lambda_.1} parent=194 // loop_exit
                  _
              $region195: #{_lambda_.1} parent=179 // pred_fallthru
                _
              %p1345 = pneg %p1234
              // Predicated region
              $region210: #{_lambda_.1} parent=179 // pred_check
                _
              $region211: #{_lambda_.1} parent=179 // pred_check_branch
                %1347 = sbr.rel (%p1234) target = $region213
              $region212: #{_lambda_.1} parent=179 // pred_region
                %s1348 = sand.u32 %s1210, 7
                %s1349 = ssub.s32 %s1210, %s1348
                %s1350 = scalar_lea.vmem %s1194, %s1349 [#allocation4]
                %s1351 = ssub.s32 %s1210, %s1348
                %s1352 = scalar_lea.vmem %s1209, %s1351
                %s1353 = sshrl.u32 %s1210, 3
                %s1354 = sshrl.u32 %s1353, 5
                // While loop
                $region214: #{_lambda_.1} parent=212 // loop_pre_header
                  _
                $region215: #{_lambda_.1} parent=212 // loop_header
                  %s1356 = sphi 0, %s1358
                  %p1357 = scmp.ge.s32.totalorder %s1356, %s1354
                  %s1361 = sphi 0, %s1430
                  %s1362 = sphi %s1194, %s1433
                  %s1363 = sphi %s1209, %s1434
                $region216: #{_lambda_.1} parent=212 // loop_header_branch
                  %1360 = sbr.rel (%p1357) target = $region220
                $region217: #{_lambda_.1} parent=212 // loop_body
                  %v1364 = vld [vmem:[%s1362] sm:$0xff]
                  %1365 = vst [vmem:[%s1363] sm:$0xff] %v1364
                  %v1366 = vld [vmem:[%s1362 + $0x8] sm:$0xff]
                  %1367 = vst [vmem:[%s1363 + $0x8] sm:$0xff] %v1366
                  %v1368 = vld [vmem:[%s1362 + $0x10] sm:$0xff]
                  %1369 = vst [vmem:[%s1363 + $0x10] sm:$0xff] %v1368
                  %v1370 = vld [vmem:[%s1362 + $0x18] sm:$0xff]
                  %1371 = vst [vmem:[%s1363 + $0x18] sm:$0xff] %v1370
                  %v1372 = vld [vmem:[%s1362 + $0x20] sm:$0xff]
                  %1373 = vst [vmem:[%s1363 + $0x20] sm:$0xff] %v1372
                  %v1374 = vld [vmem:[%s1362 + $0x28] sm:$0xff]
                  %1375 = vst [vmem:[%s1363 + $0x28] sm:$0xff] %v1374
                  %v1376 = vld [vmem:[%s1362 + $0x30] sm:$0xff]
                  %1377 = vst [vmem:[%s1363 + $0x30] sm:$0xff] %v1376
                  %v1378 = vld [vmem:[%s1362 + $0x38] sm:$0xff]
                  %1379 = vst [vmem:[%s1363 + $0x38] sm:$0xff] %v1378
                  %v1380 = vld [vmem:[%s1362 + $0x40] sm:$0xff]
                  %1381 = vst [vmem:[%s1363 + $0x40] sm:$0xff] %v1380
                  %v1382 = vld [vmem:[%s1362 + $0x48] sm:$0xff]
                  %1383 = vst [vmem:[%s1363 + $0x48] sm:$0xff] %v1382
                  %v1384 = vld [vmem:[%s1362 + $0x50] sm:$0xff]
                  %1385 = vst [vmem:[%s1363 + $0x50] sm:$0xff] %v1384
                  %v1386 = vld [vmem:[%s1362 + $0x58] sm:$0xff]
                  %1387 = vst [vmem:[%s1363 + $0x58] sm:$0xff] %v1386
                  %v1388 = vld [vmem:[%s1362 + $0x60] sm:$0xff]
                  %1389 = vst [vmem:[%s1363 + $0x60] sm:$0xff] %v1388
                  %v1390 = vld [vmem:[%s1362 + $0x68] sm:$0xff]
                  %1391 = vst [vmem:[%s1363 + $0x68] sm:$0xff] %v1390
                  %v1392 = vld [vmem:[%s1362 + $0x70] sm:$0xff]
                  %1393 = vst [vmem:[%s1363 + $0x70] sm:$0xff] %v1392
                  %v1394 = vld [vmem:[%s1362 + $0x78] sm:$0xff]
                  %1395 = vst [vmem:[%s1363 + $0x78] sm:$0xff] %v1394
                  %v1396 = vld [vmem:[%s1362 + $0x80] sm:$0xff]
                  %1397 = vst [vmem:[%s1363 + $0x80] sm:$0xff] %v1396
                  %v1398 = vld [vmem:[%s1362 + $0x88] sm:$0xff]
                  %1399 = vst [vmem:[%s1363 + $0x88] sm:$0xff] %v1398
                  %v1400 = vld [vmem:[%s1362 + $0x90] sm:$0xff]
                  %1401 = vst [vmem:[%s1363 + $0x90] sm:$0xff] %v1400
                  %v1402 = vld [vmem:[%s1362 + $0x98] sm:$0xff]
                  %1403 = vst [vmem:[%s1363 + $0x98] sm:$0xff] %v1402
                  %v1404 = vld [vmem:[%s1362 + $0xa0] sm:$0xff]
                  %1405 = vst [vmem:[%s1363 + $0xa0] sm:$0xff] %v1404
                  %v1406 = vld [vmem:[%s1362 + $0xa8] sm:$0xff]
                  %1407 = vst [vmem:[%s1363 + $0xa8] sm:$0xff] %v1406
                  %v1408 = vld [vmem:[%s1362 + $0xb0] sm:$0xff]
                  %1409 = vst [vmem:[%s1363 + $0xb0] sm:$0xff] %v1408
                  %v1410 = vld [vmem:[%s1362 + $0xb8] sm:$0xff]
                  %1411 = vst [vmem:[%s1363 + $0xb8] sm:$0xff] %v1410
                  %v1412 = vld [vmem:[%s1362 + $0xc0] sm:$0xff]
                  %1413 = vst [vmem:[%s1363 + $0xc0] sm:$0xff] %v1412
                  %v1414 = vld [vmem:[%s1362 + $0xc8] sm:$0xff]
                  %1415 = vst [vmem:[%s1363 + $0xc8] sm:$0xff] %v1414
                  %v1416 = vld [vmem:[%s1362 + $0xd0] sm:$0xff]
                  %1417 = vst [vmem:[%s1363 + $0xd0] sm:$0xff] %v1416
                  %v1418 = vld [vmem:[%s1362 + $0xd8] sm:$0xff]
                  %1419 = vst [vmem:[%s1363 + $0xd8] sm:$0xff] %v1418
                  %v1420 = vld [vmem:[%s1362 + $0xe0] sm:$0xff]
                  %1421 = vst [vmem:[%s1363 + $0xe0] sm:$0xff] %v1420
                  %v1422 = vld [vmem:[%s1362 + $0xe8] sm:$0xff]
                  %1423 = vst [vmem:[%s1363 + $0xe8] sm:$0xff] %v1422
                  %v1424 = vld [vmem:[%s1362 + $0xf0] sm:$0xff]
                  %1425 = vst [vmem:[%s1363 + $0xf0] sm:$0xff] %v1424
                  %v1426 = vld [vmem:[%s1362 + $0xf8] sm:$0xff]
                  %1427 = vst [vmem:[%s1363 + $0xf8] sm:$0xff] %v1426
                  %s1428 = sadd.s32 1, %s1361
                  %p1429 = scmp.ge.s32.totalorder %s1428, %s1354
                  %s1430 = scalar_select %p1429, 0, %s1428
                  %s1431 = smul.u32 %s1430, 256
                  %s1432 = smul.u32 %s1430, 256
                  %s1433 = scalar_lea.vmem %s1194, %s1431 [#allocation4]
                  %s1434 = scalar_lea.vmem %s1209, %s1432
                $region218: #{_lambda_.1} parent=212 // loop_footer
                  %s1358 = sadd.s32 %s1356, 1
                $region219: #{_lambda_.1} parent=212 // loop_footer_branch
                  %1355 = sbr.rel target = $region215
                $region220: #{_lambda_.1} parent=212 // loop_exit
                  _
                %s1435 = sshrl.u32 %s1353, 5
                %s1436 = sand.u32 %s1353, 31
                %s1437 = smul.u32 %s1435, 32
                %s1438 = smul.u32 8, %s1437
                %s1439 = scalar_lea.vmem %s1194, %s1438 [#allocation4]
                %s1440 = smul.u32 8, %s1437
                %s1441 = scalar_lea.vmem %s1209, %s1440
                // While loop
                $region221: #{_lambda_.1} parent=212 // loop_pre_header
                  _
                $region222: #{_lambda_.1} parent=212 // loop_header
                  %s1443 = sphi 0, %s1445
                  %p1444 = scmp.ge.s32.totalorder %s1443, %s1436
                  %s1448 = sphi 0, %s1455
                  %s1449 = sphi %s1439, %s1458
                  %s1450 = sphi %s1441, %s1459
                $region223: #{_lambda_.1} parent=212 // loop_header_branch
                  %1447 = sbr.rel (%p1444) target = $region227
                $region224: #{_lambda_.1} parent=212 // loop_body
                  %v1451 = vld [vmem:[%s1449] sm:$0xff]
                  %1452 = vst [vmem:[%s1450] sm:$0xff] %v1451
                  %s1453 = sadd.s32 1, %s1448
                  %p1454 = scmp.ge.s32.totalorder %s1453, %s1436
                  %s1455 = scalar_select %p1454, 0, %s1453
                  %s1456 = smul.u32 %s1455, 8
                  %s1457 = smul.u32 %s1455, 8
                  %s1458 = scalar_lea.vmem %s1439, %s1456 [#allocation4]
                  %s1459 = scalar_lea.vmem %s1441, %s1457
                $region225: #{_lambda_.1} parent=212 // loop_footer
                  %s1445 = sadd.s32 %s1443, 1
                $region226: #{_lambda_.1} parent=212 // loop_footer_branch
                  %1442 = sbr.rel target = $region222
                $region227: #{_lambda_.1} parent=212 // loop_exit
                  _
                %s1460 = sshll.u32 1, %s1348
                %s1461 = ssub.s32 %s1460, 1
                loop: start=0, step=1, limit=1
                $region228: #{_lambda_.1} parent=212 // loop_pre_header
                  _
                $region229: #{_lambda_.1} parent=212 // loop_header
                  %s1463 = sphi 0, %s1467
                  %p1464 = scmp.ge.s32.totalorder %s1463, 1
                  %s1468 = sphi %s1350, %s1350
                  %s1469 = sphi %s1352, %s1352
                $region230: #{_lambda_.1} parent=212 // loop_header_branch
                  %1466 = sbr.rel (%p1464) target = $region234
                $region231: #{_lambda_.1} parent=212 // loop_body
                  %v1470 = vld [vmem:[%s1468] sm:%s1461]
                  %1471 = vst [vmem:[%s1469] sm:%s1461] %v1470
                $region232: #{_lambda_.1} parent=212 // loop_footer
                  %s1467 = sadd.s32 1, %s1463
                $region233: #{_lambda_.1} parent=212 // loop_footer_branch
                  %1462 = sbr.rel target = $region229
                $region234: #{_lambda_.1} parent=212 // loop_exit
                  _
              $region213: #{_lambda_.1} parent=179 // pred_fallthru
                _
            $region180: #{_lambda_.1} parent=175 // pred_fallthru
              _
            // Predicated region
            $region181: #{_lambda_.1} parent=175 // pred_check
              %p1218 = pneg %p1214
            $region182: #{_lambda_.1} parent=175 // pred_check_branch
              %1220 = sbr.rel (%p1218) target = $region184
            $region183: #{_lambda_.1} parent=175 // pred_region
              %s1221 = sshll.u32 1, %s1210
              %s1222 = ssub.s32 %s1221, 1
              loop: start=0, step=1, limit=1
              $region185: #{_lambda_.1} parent=183 // loop_pre_header
                _
              $region186: #{_lambda_.1} parent=183 // loop_header
                %s1224 = sphi 0, %s1228
                %p1225 = scmp.ge.s32.totalorder %s1224, 1
                %s1229 = sphi %s1194, %s1194
                %s1230 = sphi %s1209, %s1209
              $region187: #{_lambda_.1} parent=183 // loop_header_branch
                %1227 = sbr.rel (%p1225) target = $region191
              $region188: #{_lambda_.1} parent=183 // loop_body
                %v1231 = vld [vmem:[%s1229] sm:%s1222]
                %1232 = vst [vmem:[%s1230] sm:%s1222] %v1231
              $region189: #{_lambda_.1} parent=183 // loop_footer
                %s1228 = sadd.s32 1, %s1224
              $region190: #{_lambda_.1} parent=183 // loop_footer_branch
                %1223 = sbr.rel target = $region186
              $region191: #{_lambda_.1} parent=183 // loop_exit
                _
            $region184: #{_lambda_.1} parent=175 // pred_fallthru
              _
          $region176: #{_lambda_.1} parent=171 // pred_fallthru
            _
          %1472 = vnop
        $region172: #{_lambda_.1} parent=159 // pred_fallthru
          _
        // Predicated region
        $region235: #{_lambda_.1} parent=159 // pred_check
          %p1473 = pneg %p165
        $region236: #{_lambda_.1} parent=159 // pred_check_branch
          %1475 = sbr.rel (%p1473) target = $region238
        $region237: #{_lambda_.1} parent=159 // pred_region
          %s1476 = smul.u32 2, %s17
          %s1477 = ssub.s32 5, %s1476
          %p1478 = scmp.lt.s32.totalorder %s1477, 2
          %s1479 = scalar_select %p1478, %s1477, 2
          %s1480 = smul.u32 8, %s1479
          %p1481 = scmp.ne.s32.totalorder 0, %s1480
          %s1482 = smul.addr %s1476, 8
          %s1483 = scalar_lea.vmem %s5, %s1482
          %s1484 = smul.u32 %s1479, 8
          // Predicated region
          $region239: #{_lambda_.1} parent=237 // pred_check
            %p1485 = pneg %p1481
          $region240: #{_lambda_.1} parent=237 // pred_check_branch
            %1487 = sbr.rel (%p1485) target = $region242
          $region241: #{_lambda_.1} parent=237 // pred_region
            %p1488 = scmp.lt.u32.totalorder %s1484, 8
            %p1489 = pneg %p1488
            // Predicated region
            $region243: #{_lambda_.1} parent=241 // pred_check
              _
            $region244: #{_lambda_.1} parent=241 // pred_check_branch
              %1491 = sbr.rel (%p1488) target = $region246
            $region245: #{_lambda_.1} parent=241 // pred_region
              %s1507 = sand.u32 %s1484, 7
              %p1508 = scmp.eq.s32.totalorder %s1507, 0
              // Predicated region
              $region258: #{_lambda_.1} parent=245 // pred_check
                %p1509 = pneg %p1508
              $region259: #{_lambda_.1} parent=245 // pred_check_branch
                %1511 = sbr.rel (%p1509) target = $region261
              $region260: #{_lambda_.1} parent=245 // pred_region
                %s1512 = sshrl.u32 %s1484, 3
                %s1513 = sshrl.u32 %s1512, 5
                // While loop
                $region262: #{_lambda_.1} parent=260 // loop_pre_header
                  _
                $region263: #{_lambda_.1} parent=260 // loop_header
                  %s1515 = sphi 0, %s1517
                  %p1516 = scmp.ge.s32.totalorder %s1515, %s1513
                  %s1520 = sphi 0, %s1589
                  %s1521 = sphi %s1198, %s1592
                  %s1522 = sphi %s1483, %s1593
                $region264: #{_lambda_.1} parent=260 // loop_header_branch
                  %1519 = sbr.rel (%p1516) target = $region268
                $region265: #{_lambda_.1} parent=260 // loop_body
                  %v1523 = vld [vmem:[%s1521] sm:$0xff]
                  %1524 = vst [vmem:[%s1522] sm:$0xff] %v1523
                  %v1525 = vld [vmem:[%s1521 + $0x8] sm:$0xff]
                  %1526 = vst [vmem:[%s1522 + $0x8] sm:$0xff] %v1525
                  %v1527 = vld [vmem:[%s1521 + $0x10] sm:$0xff]
                  %1528 = vst [vmem:[%s1522 + $0x10] sm:$0xff] %v1527
                  %v1529 = vld [vmem:[%s1521 + $0x18] sm:$0xff]
                  %1530 = vst [vmem:[%s1522 + $0x18] sm:$0xff] %v1529
                  %v1531 = vld [vmem:[%s1521 + $0x20] sm:$0xff]
                  %1532 = vst [vmem:[%s1522 + $0x20] sm:$0xff] %v1531
                  %v1533 = vld [vmem:[%s1521 + $0x28] sm:$0xff]
                  %1534 = vst [vmem:[%s1522 + $0x28] sm:$0xff] %v1533
                  %v1535 = vld [vmem:[%s1521 + $0x30] sm:$0xff]
                  %1536 = vst [vmem:[%s1522 + $0x30] sm:$0xff] %v1535
                  %v1537 = vld [vmem:[%s1521 + $0x38] sm:$0xff]
                  %1538 = vst [vmem:[%s1522 + $0x38] sm:$0xff] %v1537
                  %v1539 = vld [vmem:[%s1521 + $0x40] sm:$0xff]
                  %1540 = vst [vmem:[%s1522 + $0x40] sm:$0xff] %v1539
                  %v1541 = vld [vmem:[%s1521 + $0x48] sm:$0xff]
                  %1542 = vst [vmem:[%s1522 + $0x48] sm:$0xff] %v1541
                  %v1543 = vld [vmem:[%s1521 + $0x50] sm:$0xff]
                  %1544 = vst [vmem:[%s1522 + $0x50] sm:$0xff] %v1543
                  %v1545 = vld [vmem:[%s1521 + $0x58] sm:$0xff]
                  %1546 = vst [vmem:[%s1522 + $0x58] sm:$0xff] %v1545
                  %v1547 = vld [vmem:[%s1521 + $0x60] sm:$0xff]
                  %1548 = vst [vmem:[%s1522 + $0x60] sm:$0xff] %v1547
                  %v1549 = vld [vmem:[%s1521 + $0x68] sm:$0xff]
                  %1550 = vst [vmem:[%s1522 + $0x68] sm:$0xff] %v1549
                  %v1551 = vld [vmem:[%s1521 + $0x70] sm:$0xff]
                  %1552 = vst [vmem:[%s1522 + $0x70] sm:$0xff] %v1551
                  %v1553 = vld [vmem:[%s1521 + $0x78] sm:$0xff]
                  %1554 = vst [vmem:[%s1522 + $0x78] sm:$0xff] %v1553
                  %v1555 = vld [vmem:[%s1521 + $0x80] sm:$0xff]
                  %1556 = vst [vmem:[%s1522 + $0x80] sm:$0xff] %v1555
                  %v1557 = vld [vmem:[%s1521 + $0x88] sm:$0xff]
                  %1558 = vst [vmem:[%s1522 + $0x88] sm:$0xff] %v1557
                  %v1559 = vld [vmem:[%s1521 + $0x90] sm:$0xff]
                  %1560 = vst [vmem:[%s1522 + $0x90] sm:$0xff] %v1559
                  %v1561 = vld [vmem:[%s1521 + $0x98] sm:$0xff]
                  %1562 = vst [vmem:[%s1522 + $0x98] sm:$0xff] %v1561
                  %v1563 = vld [vmem:[%s1521 + $0xa0] sm:$0xff]
                  %1564 = vst [vmem:[%s1522 + $0xa0] sm:$0xff] %v1563
                  %v1565 = vld [vmem:[%s1521 + $0xa8] sm:$0xff]
                  %1566 = vst [vmem:[%s1522 + $0xa8] sm:$0xff] %v1565
                  %v1567 = vld [vmem:[%s1521 + $0xb0] sm:$0xff]
                  %1568 = vst [vmem:[%s1522 + $0xb0] sm:$0xff] %v1567
                  %v1569 = vld [vmem:[%s1521 + $0xb8] sm:$0xff]
                  %1570 = vst [vmem:[%s1522 + $0xb8] sm:$0xff] %v1569
                  %v1571 = vld [vmem:[%s1521 + $0xc0] sm:$0xff]
                  %1572 = vst [vmem:[%s1522 + $0xc0] sm:$0xff] %v1571
                  %v1573 = vld [vmem:[%s1521 + $0xc8] sm:$0xff]
                  %1574 = vst [vmem:[%s1522 + $0xc8] sm:$0xff] %v1573
                  %v1575 = vld [vmem:[%s1521 + $0xd0] sm:$0xff]
                  %1576 = vst [vmem:[%s1522 + $0xd0] sm:$0xff] %v1575
                  %v1577 = vld [vmem:[%s1521 + $0xd8] sm:$0xff]
                  %1578 = vst [vmem:[%s1522 + $0xd8] sm:$0xff] %v1577
                  %v1579 = vld [vmem:[%s1521 + $0xe0] sm:$0xff]
                  %1580 = vst [vmem:[%s1522 + $0xe0] sm:$0xff] %v1579
                  %v1581 = vld [vmem:[%s1521 + $0xe8] sm:$0xff]
                  %1582 = vst [vmem:[%s1522 + $0xe8] sm:$0xff] %v1581
                  %v1583 = vld [vmem:[%s1521 + $0xf0] sm:$0xff]
                  %1584 = vst [vmem:[%s1522 + $0xf0] sm:$0xff] %v1583
                  %v1585 = vld [vmem:[%s1521 + $0xf8] sm:$0xff]
                  %1586 = vst [vmem:[%s1522 + $0xf8] sm:$0xff] %v1585
                  %s1587 = sadd.s32 1, %s1520
                  %p1588 = scmp.ge.s32.totalorder %s1587, %s1513
                  %s1589 = scalar_select %p1588, 0, %s1587
                  %s1590 = smul.u32 %s1589, 256
                  %s1591 = smul.u32 %s1589, 256
                  %s1592 = scalar_lea.vmem %s1198, %s1590 [#allocation5]
                  %s1593 = scalar_lea.vmem %s1483, %s1591
                $region266: #{_lambda_.1} parent=260 // loop_footer
                  %s1517 = sadd.s32 %s1515, 1
                $region267: #{_lambda_.1} parent=260 // loop_footer_branch
                  %1514 = sbr.rel target = $region263
                $region268: #{_lambda_.1} parent=260 // loop_exit
                  _
                %s1594 = sshrl.u32 %s1512, 5
                %s1595 = sand.u32 %s1512, 31
                %s1596 = smul.u32 %s1594, 32
                %s1597 = smul.u32 8, %s1596
                %s1598 = scalar_lea.vmem %s1198, %s1597 [#allocation5]
                %s1599 = smul.u32 8, %s1596
                %s1600 = scalar_lea.vmem %s1483, %s1599
                // While loop
                $region269: #{_lambda_.1} parent=260 // loop_pre_header
                  _
                $region270: #{_lambda_.1} parent=260 // loop_header
                  %s1602 = sphi 0, %s1604
                  %p1603 = scmp.ge.s32.totalorder %s1602, %s1595
                  %s1607 = sphi 0, %s1614
                  %s1608 = sphi %s1598, %s1617
                  %s1609 = sphi %s1600, %s1618
                $region271: #{_lambda_.1} parent=260 // loop_header_branch
                  %1606 = sbr.rel (%p1603) target = $region275
                $region272: #{_lambda_.1} parent=260 // loop_body
                  %v1610 = vld [vmem:[%s1608] sm:$0xff]
                  %1611 = vst [vmem:[%s1609] sm:$0xff] %v1610
                  %s1612 = sadd.s32 1, %s1607
                  %p1613 = scmp.ge.s32.totalorder %s1612, %s1595
                  %s1614 = scalar_select %p1613, 0, %s1612
                  %s1615 = smul.u32 %s1614, 8
                  %s1616 = smul.u32 %s1614, 8
                  %s1617 = scalar_lea.vmem %s1598, %s1615 [#allocation5]
                  %s1618 = scalar_lea.vmem %s1600, %s1616
                $region273: #{_lambda_.1} parent=260 // loop_footer
                  %s1604 = sadd.s32 %s1602, 1
                $region274: #{_lambda_.1} parent=260 // loop_footer_branch
                  %1601 = sbr.rel target = $region270
                $region275: #{_lambda_.1} parent=260 // loop_exit
                  _
              $region261: #{_lambda_.1} parent=245 // pred_fallthru
                _
              %p1619 = pneg %p1508
              // Predicated region
              $region276: #{_lambda_.1} parent=245 // pred_check
                _
              $region277: #{_lambda_.1} parent=245 // pred_check_branch
                %1621 = sbr.rel (%p1508) target = $region279
              $region278: #{_lambda_.1} parent=245 // pred_region
                %s1622 = sand.u32 %s1484, 7
                %s1623 = ssub.s32 %s1484, %s1622
                %s1624 = scalar_lea.vmem %s1198, %s1623 [#allocation5]
                %s1625 = ssub.s32 %s1484, %s1622
                %s1626 = scalar_lea.vmem %s1483, %s1625
                %s1627 = sshrl.u32 %s1484, 3
                %s1628 = sshrl.u32 %s1627, 5
                // While loop
                $region280: #{_lambda_.1} parent=278 // loop_pre_header
                  _
                $region281: #{_lambda_.1} parent=278 // loop_header
                  %s1630 = sphi 0, %s1632
                  %p1631 = scmp.ge.s32.totalorder %s1630, %s1628
                  %s1635 = sphi 0, %s1704
                  %s1636 = sphi %s1198, %s1707
                  %s1637 = sphi %s1483, %s1708
                $region282: #{_lambda_.1} parent=278 // loop_header_branch
                  %1634 = sbr.rel (%p1631) target = $region286
                $region283: #{_lambda_.1} parent=278 // loop_body
                  %v1638 = vld [vmem:[%s1636] sm:$0xff]
                  %1639 = vst [vmem:[%s1637] sm:$0xff] %v1638
                  %v1640 = vld [vmem:[%s1636 + $0x8] sm:$0xff]
                  %1641 = vst [vmem:[%s1637 + $0x8] sm:$0xff] %v1640
                  %v1642 = vld [vmem:[%s1636 + $0x10] sm:$0xff]
                  %1643 = vst [vmem:[%s1637 + $0x10] sm:$0xff] %v1642
                  %v1644 = vld [vmem:[%s1636 + $0x18] sm:$0xff]
                  %1645 = vst [vmem:[%s1637 + $0x18] sm:$0xff] %v1644
                  %v1646 = vld [vmem:[%s1636 + $0x20] sm:$0xff]
                  %1647 = vst [vmem:[%s1637 + $0x20] sm:$0xff] %v1646
                  %v1648 = vld [vmem:[%s1636 + $0x28] sm:$0xff]
                  %1649 = vst [vmem:[%s1637 + $0x28] sm:$0xff] %v1648
                  %v1650 = vld [vmem:[%s1636 + $0x30] sm:$0xff]
                  %1651 = vst [vmem:[%s1637 + $0x30] sm:$0xff] %v1650
                  %v1652 = vld [vmem:[%s1636 + $0x38] sm:$0xff]
                  %1653 = vst [vmem:[%s1637 + $0x38] sm:$0xff] %v1652
                  %v1654 = vld [vmem:[%s1636 + $0x40] sm:$0xff]
                  %1655 = vst [vmem:[%s1637 + $0x40] sm:$0xff] %v1654
                  %v1656 = vld [vmem:[%s1636 + $0x48] sm:$0xff]
                  %1657 = vst [vmem:[%s1637 + $0x48] sm:$0xff] %v1656
                  %v1658 = vld [vmem:[%s1636 + $0x50] sm:$0xff]
                  %1659 = vst [vmem:[%s1637 + $0x50] sm:$0xff] %v1658
                  %v1660 = vld [vmem:[%s1636 + $0x58] sm:$0xff]
                  %1661 = vst [vmem:[%s1637 + $0x58] sm:$0xff] %v1660
                  %v1662 = vld [vmem:[%s1636 + $0x60] sm:$0xff]
                  %1663 = vst [vmem:[%s1637 + $0x60] sm:$0xff] %v1662
                  %v1664 = vld [vmem:[%s1636 + $0x68] sm:$0xff]
                  %1665 = vst [vmem:[%s1637 + $0x68] sm:$0xff] %v1664
                  %v1666 = vld [vmem:[%s1636 + $0x70] sm:$0xff]
                  %1667 = vst [vmem:[%s1637 + $0x70] sm:$0xff] %v1666
                  %v1668 = vld [vmem:[%s1636 + $0x78] sm:$0xff]
                  %1669 = vst [vmem:[%s1637 + $0x78] sm:$0xff] %v1668
                  %v1670 = vld [vmem:[%s1636 + $0x80] sm:$0xff]
                  %1671 = vst [vmem:[%s1637 + $0x80] sm:$0xff] %v1670
                  %v1672 = vld [vmem:[%s1636 + $0x88] sm:$0xff]
                  %1673 = vst [vmem:[%s1637 + $0x88] sm:$0xff] %v1672
                  %v1674 = vld [vmem:[%s1636 + $0x90] sm:$0xff]
                  %1675 = vst [vmem:[%s1637 + $0x90] sm:$0xff] %v1674
                  %v1676 = vld [vmem:[%s1636 + $0x98] sm:$0xff]
                  %1677 = vst [vmem:[%s1637 + $0x98] sm:$0xff] %v1676
                  %v1678 = vld [vmem:[%s1636 + $0xa0] sm:$0xff]
                  %1679 = vst [vmem:[%s1637 + $0xa0] sm:$0xff] %v1678
                  %v1680 = vld [vmem:[%s1636 + $0xa8] sm:$0xff]
                  %1681 = vst [vmem:[%s1637 + $0xa8] sm:$0xff] %v1680
                  %v1682 = vld [vmem:[%s1636 + $0xb0] sm:$0xff]
                  %1683 = vst [vmem:[%s1637 + $0xb0] sm:$0xff] %v1682
                  %v1684 = vld [vmem:[%s1636 + $0xb8] sm:$0xff]
                  %1685 = vst [vmem:[%s1637 + $0xb8] sm:$0xff] %v1684
                  %v1686 = vld [vmem:[%s1636 + $0xc0] sm:$0xff]
                  %1687 = vst [vmem:[%s1637 + $0xc0] sm:$0xff] %v1686
                  %v1688 = vld [vmem:[%s1636 + $0xc8] sm:$0xff]
                  %1689 = vst [vmem:[%s1637 + $0xc8] sm:$0xff] %v1688
                  %v1690 = vld [vmem:[%s1636 + $0xd0] sm:$0xff]
                  %1691 = vst [vmem:[%s1637 + $0xd0] sm:$0xff] %v1690
                  %v1692 = vld [vmem:[%s1636 + $0xd8] sm:$0xff]
                  %1693 = vst [vmem:[%s1637 + $0xd8] sm:$0xff] %v1692
                  %v1694 = vld [vmem:[%s1636 + $0xe0] sm:$0xff]
                  %1695 = vst [vmem:[%s1637 + $0xe0] sm:$0xff] %v1694
                  %v1696 = vld [vmem:[%s1636 + $0xe8] sm:$0xff]
                  %1697 = vst [vmem:[%s1637 + $0xe8] sm:$0xff] %v1696
                  %v1698 = vld [vmem:[%s1636 + $0xf0] sm:$0xff]
                  %1699 = vst [vmem:[%s1637 + $0xf0] sm:$0xff] %v1698
                  %v1700 = vld [vmem:[%s1636 + $0xf8] sm:$0xff]
                  %1701 = vst [vmem:[%s1637 + $0xf8] sm:$0xff] %v1700
                  %s1702 = sadd.s32 1, %s1635
                  %p1703 = scmp.ge.s32.totalorder %s1702, %s1628
                  %s1704 = scalar_select %p1703, 0, %s1702
                  %s1705 = smul.u32 %s1704, 256
                  %s1706 = smul.u32 %s1704, 256
                  %s1707 = scalar_lea.vmem %s1198, %s1705 [#allocation5]
                  %s1708 = scalar_lea.vmem %s1483, %s1706
                $region284: #{_lambda_.1} parent=278 // loop_footer
                  %s1632 = sadd.s32 %s1630, 1
                $region285: #{_lambda_.1} parent=278 // loop_footer_branch
                  %1629 = sbr.rel target = $region281
                $region286: #{_lambda_.1} parent=278 // loop_exit
                  _
                %s1709 = sshrl.u32 %s1627, 5
                %s1710 = sand.u32 %s1627, 31
                %s1711 = smul.u32 %s1709, 32
                %s1712 = smul.u32 8, %s1711
                %s1713 = scalar_lea.vmem %s1198, %s1712 [#allocation5]
                %s1714 = smul.u32 8, %s1711
                %s1715 = scalar_lea.vmem %s1483, %s1714
                // While loop
                $region287: #{_lambda_.1} parent=278 // loop_pre_header
                  _
                $region288: #{_lambda_.1} parent=278 // loop_header
                  %s1717 = sphi 0, %s1719
                  %p1718 = scmp.ge.s32.totalorder %s1717, %s1710
                  %s1722 = sphi 0, %s1729
                  %s1723 = sphi %s1713, %s1732
                  %s1724 = sphi %s1715, %s1733
                $region289: #{_lambda_.1} parent=278 // loop_header_branch
                  %1721 = sbr.rel (%p1718) target = $region293
                $region290: #{_lambda_.1} parent=278 // loop_body
                  %v1725 = vld [vmem:[%s1723] sm:$0xff]
                  %1726 = vst [vmem:[%s1724] sm:$0xff] %v1725
                  %s1727 = sadd.s32 1, %s1722
                  %p1728 = scmp.ge.s32.totalorder %s1727, %s1710
                  %s1729 = scalar_select %p1728, 0, %s1727
                  %s1730 = smul.u32 %s1729, 8
                  %s1731 = smul.u32 %s1729, 8
                  %s1732 = scalar_lea.vmem %s1713, %s1730 [#allocation5]
                  %s1733 = scalar_lea.vmem %s1715, %s1731
                $region291: #{_lambda_.1} parent=278 // loop_footer
                  %s1719 = sadd.s32 %s1717, 1
                $region292: #{_lambda_.1} parent=278 // loop_footer_branch
                  %1716 = sbr.rel target = $region288
                $region293: #{_lambda_.1} parent=278 // loop_exit
                  _
                %s1734 = sshll.u32 1, %s1622
                %s1735 = ssub.s32 %s1734, 1
                loop: start=0, step=1, limit=1
                $region294: #{_lambda_.1} parent=278 // loop_pre_header
                  _
                $region295: #{_lambda_.1} parent=278 // loop_header
                  %s1737 = sphi 0, %s1741
                  %p1738 = scmp.ge.s32.totalorder %s1737, 1
                  %s1742 = sphi %s1624, %s1624
                  %s1743 = sphi %s1626, %s1626
                $region296: #{_lambda_.1} parent=278 // loop_header_branch
                  %1740 = sbr.rel (%p1738) target = $region300
                $region297: #{_lambda_.1} parent=278 // loop_body
                  %v1744 = vld [vmem:[%s1742] sm:%s1735]
                  %1745 = vst [vmem:[%s1743] sm:%s1735] %v1744
                $region298: #{_lambda_.1} parent=278 // loop_footer
                  %s1741 = sadd.s32 1, %s1737
                $region299: #{_lambda_.1} parent=278 // loop_footer_branch
                  %1736 = sbr.rel target = $region295
                $region300: #{_lambda_.1} parent=278 // loop_exit
                  _
              $region279: #{_lambda_.1} parent=245 // pred_fallthru
                _
            $region246: #{_lambda_.1} parent=241 // pred_fallthru
              _
            // Predicated region
            $region247: #{_lambda_.1} parent=241 // pred_check
              %p1492 = pneg %p1488
            $region248: #{_lambda_.1} parent=241 // pred_check_branch
              %1494 = sbr.rel (%p1492) target = $region250
            $region249: #{_lambda_.1} parent=241 // pred_region
              %s1495 = sshll.u32 1, %s1484
              %s1496 = ssub.s32 %s1495, 1
              loop: start=0, step=1, limit=1
              $region251: #{_lambda_.1} parent=249 // loop_pre_header
                _
              $region252: #{_lambda_.1} parent=249 // loop_header
                %s1498 = sphi 0, %s1502
                %p1499 = scmp.ge.s32.totalorder %s1498, 1
                %s1503 = sphi %s1198, %s1198
                %s1504 = sphi %s1483, %s1483
              $region253: #{_lambda_.1} parent=249 // loop_header_branch
                %1501 = sbr.rel (%p1499) target = $region257
              $region254: #{_lambda_.1} parent=249 // loop_body
                %v1505 = vld [vmem:[%s1503] sm:%s1496]
                %1506 = vst [vmem:[%s1504] sm:%s1496] %v1505
              $region255: #{_lambda_.1} parent=249 // loop_footer
                %s1502 = sadd.s32 1, %s1498
              $region256: #{_lambda_.1} parent=249 // loop_footer_branch
                %1497 = sbr.rel target = $region252
              $region257: #{_lambda_.1} parent=249 // loop_exit
                _
            $region250: #{_lambda_.1} parent=241 // pred_fallthru
              _
          $region242: #{_lambda_.1} parent=237 // pred_fallthru
            _
          %1746 = vnop
        $region238: #{_lambda_.1} parent=159 // pred_fallthru
          _
      $region160: #{_lambda_.1} parent=5 // pred_fallthru
        _
      %p1747 = scmp.le.s32.totalorder 2, %s12
      // Predicated region
      $region301: #{_lambda_.1} parent=5 // pred_check
        %p1748 = pneg %p1747
      $region302: #{_lambda_.1} parent=5 // pred_check_branch
        %1750 = sbr.rel (%p1748) target = $region304
      $region303: #{_lambda_.1} parent=5 // pred_region
        %s1751 = ssub.s32 %s12, 2
        // Predicated region
        $region305: #{_lambda_.1} parent=303 // pred_check
          %p1752 = pneg %p145
        $region306: #{_lambda_.1} parent=303 // pred_check_branch
          %1754 = sbr.rel (%p1752) target = $region308
        $region307: #{_lambda_.1} parent=303 // pred_region
          %s1755 = sand.u32 %s130, 1
          %s1756 = sand.u32 %s130, 1
          %s1757 = smul.addr %s1756, 16
          %s1758 = scalar_lea.vmem [#allocation4], %s1757
        $region308: #{_lambda_.1} parent=303 // pred_fallthru
          _
        // Predicated region
        $region309: #{_lambda_.1} parent=303 // pred_check
          %p1759 = pneg %p171
        $region310: #{_lambda_.1} parent=303 // pred_check_branch
          %1761 = sbr.rel (%p1759) target = $region312
        $region311: #{_lambda_.1} parent=303 // pred_region
          %s1762 = sand.u32 %s156, 1
          %s1763 = sand.u32 %s156, 1
          %s1764 = smul.addr %s1763, 16
          %s1765 = scalar_lea.vmem [#allocation5], %s1764
        $region312: #{_lambda_.1} parent=303 // pred_fallthru
          _
      $region304: #{_lambda_.1} parent=5 // pred_fallthru
        _
    $region6: #{_lambda_.1} parent=1 // loop_footer
      %s16 = sadd.s32 1, %s12
    $region7: #{_lambda_.1} parent=1 // loop_footer_branch
      %11 = sbr.rel target = $region3
    $region8: #{_lambda_.1} parent=1 // loop_exit
      _

// kernel: reverse.1
$region0: #{reverse.1}
  #allocation0 [shape = 's32[1]{0}', space=sflag, size = 0x4, scoped, tag = 'scoped memory for reverse.1']
  %s0 = inlined_call_operand.vmem [shape: f32[2,4,16,16,3], index: 0, kind: input, shape index: {}]
  %s1 = inlined_call_operand.vmem [shape: f32[2,4,16,16,3], index: 1, kind: output, shape index: {}]
  %s2 = scalar_lea.vmem %s0, 32
  %v3 = vld [vmem:[%s2] sm:$0xff]
  %4 = vst [vmem:[%s1] sm:$0xff] %v3
  %s5 = scalar_lea.vmem %s0, 224
  %v6 = vld [vmem:[%s5] sm:$0xff]
  %s7 = scalar_lea.vmem %s1, 192
  %8 = vst [vmem:[%s7] sm:$0xff] %v6
  %s9 = scalar_lea.vmem %s0, 80
  %v10 = vld [vmem:[%s9] sm:$0xff]
  %s11 = scalar_lea.vmem %s1, 48
  %12 = vst [vmem:[%s11] sm:$0xff] %v10
  %s13 = scalar_lea.vmem %s0, 272
  %v14 = vld [vmem:[%s13] sm:$0xff]
  %s15 = scalar_lea.vmem %s1, 240
  %16 = vst [vmem:[%s15] sm:$0xff] %v14
  %s17 = scalar_lea.vmem %s0, 128
  %v18 = vld [vmem:[%s17] sm:$0xff]
  %s19 = scalar_lea.vmem %s1, 96
  %20 = vst [vmem:[%s19] sm:$0xff] %v18
  %s21 = scalar_lea.vmem %s0, 320
  %v22 = vld [vmem:[%s21] sm:$0xff]
  %s23 = scalar_lea.vmem %s1, 288
  %24 = vst [vmem:[%s23] sm:$0xff] %v22
  %s25 = scalar_lea.vmem %s0, 176
  %v26 = vld [vmem:[%s25] sm:$0xff]
  %s27 = scalar_lea.vmem %s1, 144
  %28 = vst [vmem:[%s27] sm:$0xff] %v26
  %s29 = scalar_lea.vmem %s0, 368
  %v30 = vld [vmem:[%s29] sm:$0xff]
  %s31 = scalar_lea.vmem %s1, 336
  %32 = vst [vmem:[%s31] sm:$0xff] %v30
  %s33 = scalar_lea.vmem %s0, 16
  %v34 = vld [vmem:[%s33] sm:$0xff]
  %s35 = scalar_lea.vmem %s1, 16
  %36 = vst [vmem:[%s35] sm:$0xff] %v34
  %s37 = scalar_lea.vmem %s0, 208
  %v38 = vld [vmem:[%s37] sm:$0xff]
  %s39 = scalar_lea.vmem %s1, 208
  %40 = vst [vmem:[%s39] sm:$0xff] %v38
  %s41 = scalar_lea.vmem %s0, 64
  %v42 = vld [vmem:[%s41] sm:$0xff]
  %s43 = scalar_lea.vmem %s1, 64
  %44 = vst [vmem:[%s43] sm:$0xff] %v42
  %s45 = scalar_lea.vmem %s0, 256
  %v46 = vld [vmem:[%s45] sm:$0xff]
  %s47 = scalar_lea.vmem %s1, 256
  %48 = vst [vmem:[%s47] sm:$0xff] %v46
  %s49 = scalar_lea.vmem %s0, 112
  %v50 = vld [vmem:[%s49] sm:$0xff]
  %s51 = scalar_lea.vmem %s1, 112
  %52 = vst [vmem:[%s51] sm:$0xff] %v50
  %s53 = scalar_lea.vmem %s0, 304
  %v54 = vld [vmem:[%s53] sm:$0xff]
  %s55 = scalar_lea.vmem %s1, 304
  %56 = vst [vmem:[%s55] sm:$0xff] %v54
  %s57 = scalar_lea.vmem %s0, 160
  %v58 = vld [vmem:[%s57] sm:$0xff]
  %s59 = scalar_lea.vmem %s1, 160
  %60 = vst [vmem:[%s59] sm:$0xff] %v58
  %s61 = scalar_lea.vmem %s0, 352
  %v62 = vld [vmem:[%s61] sm:$0xff]
  %s63 = scalar_lea.vmem %s1, 352
  %64 = vst [vmem:[%s63] sm:$0xff] %v62
  %v65 = vld [vmem:[%s0] sm:$0xff]
  %s66 = scalar_lea.vmem %s1, 32
  %67 = vst [vmem:[%s66] sm:$0xff] %v65
  %s68 = scalar_lea.vmem %s0, 192
  %v69 = vld [vmem:[%s68] sm:$0xff]
  %s70 = scalar_lea.vmem %s1, 224
  %71 = vst [vmem:[%s70] sm:$0xff] %v69
  %s72 = scalar_lea.vmem %s0, 48
  %v73 = vld [vmem:[%s72] sm:$0xff]
  %s74 = scalar_lea.vmem %s1, 80
  %75 = vst [vmem:[%s74] sm:$0xff] %v73
  %s76 = scalar_lea.vmem %s0, 240
  %v77 = vld [vmem:[%s76] sm:$0xff]
  %s78 = scalar_lea.vmem %s1, 272
  %79 = vst [vmem:[%s78] sm:$0xff] %v77
  %s80 = scalar_lea.vmem %s0, 96
  %v81 = vld [vmem:[%s80] sm:$0xff]
  %s82 = scalar_lea.vmem %s1, 128
  %83 = vst [vmem:[%s82] sm:$0xff] %v81
  %s84 = scalar_lea.vmem %s0, 288
  %v85 = vld [vmem:[%s84] sm:$0xff]
  %s86 = scalar_lea.vmem %s1, 320
  %87 = vst [vmem:[%s86] sm:$0xff] %v85
  %s88 = scalar_lea.vmem %s0, 144
  %v89 = vld [vmem:[%s88] sm:$0xff]
  %s90 = scalar_lea.vmem %s1, 176
  %91 = vst [vmem:[%s90] sm:$0xff] %v89
  %s92 = scalar_lea.vmem %s0, 336
  %v93 = vld [vmem:[%s92] sm:$0xff]
  %s94 = scalar_lea.vmem %s1, 368
  %95 = vst [vmem:[%s94] sm:$0xff] %v93
  %s96 = scalar_lea.vmem %s0, 40
  %v97 = vld [vmem:[%s96] sm:$0xff]
  %s98 = scalar_lea.vmem %s1, 8
  %99 = vst [vmem:[%s98] sm:$0xff] %v97
  %s100 = scalar_lea.vmem %s0, 232
  %v101 = vld [vmem:[%s100] sm:$0xff]
  %s102 = scalar_lea.vmem %s1, 200
  %103 = vst [vmem:[%s102] sm:$0xff] %v101
  %s104 = scalar_lea.vmem %s0, 88
  %v105 = vld [vmem:[%s104] sm:$0xff]
  %s106 = scalar_lea.vmem %s1, 56
  %107 = vst [vmem:[%s106] sm:$0xff] %v105
  %s108 = scalar_lea.vmem %s0, 280
  %v109 = vld [vmem:[%s108] sm:$0xff]
  %s110 = scalar_lea.vmem %s1, 248
  %111 = vst [vmem:[%s110] sm:$0xff] %v109
  %s112 = scalar_lea.vmem %s0, 136
  %v113 = vld [vmem:[%s112] sm:$0xff]
  %s114 = scalar_lea.vmem %s1, 104
  %115 = vst [vmem:[%s114] sm:$0xff] %v113
  %s116 = scalar_lea.vmem %s0, 328
  %v117 = vld [vmem:[%s116] sm:$0xff]
  %s118 = scalar_lea.vmem %s1, 296
  %119 = vst [vmem:[%s118] sm:$0xff] %v117
  %s120 = scalar_lea.vmem %s0, 184
  %v121 = vld [vmem:[%s120] sm:$0xff]
  %s122 = scalar_lea.vmem %s1, 152
  %123 = vst [vmem:[%s122] sm:$0xff] %v121
  %s124 = scalar_lea.vmem %s0, 376
  %v125 = vld [vmem:[%s124] sm:$0xff]
  %s126 = scalar_lea.vmem %s1, 344
  %127 = vst [vmem:[%s126] sm:$0xff] %v125
  %s128 = scalar_lea.vmem %s0, 24
  %v129 = vld [vmem:[%s128] sm:$0xff]
  %s130 = scalar_lea.vmem %s1, 24
  %131 = vst [vmem:[%s130] sm:$0xff] %v129
  %s132 = scalar_lea.vmem %s0, 216
  %v133 = vld [vmem:[%s132] sm:$0xff]
  %s134 = scalar_lea.vmem %s1, 216
  %135 = vst [vmem:[%s134] sm:$0xff] %v133
  %s136 = scalar_lea.vmem %s0, 72
  %v137 = vld [vmem:[%s136] sm:$0xff]
  %s138 = scalar_lea.vmem %s1, 72
  %139 = vst [vmem:[%s138] sm:$0xff] %v137
  %s140 = scalar_lea.vmem %s0, 264
  %v141 = vld [vmem:[%s140] sm:$0xff]
  %s142 = scalar_lea.vmem %s1, 264
  %143 = vst [vmem:[%s142] sm:$0xff] %v141
  %s144 = scalar_lea.vmem %s0, 120
  %v145 = vld [vmem:[%s144] sm:$0xff]
  %s146 = scalar_lea.vmem %s1, 120
  %147 = vst [vmem:[%s146] sm:$0xff] %v145
  %s148 = scalar_lea.vmem %s0, 312
  %v149 = vld [vmem:[%s148] sm:$0xff]
  %s150 = scalar_lea.vmem %s1, 312
  %151 = vst [vmem:[%s150] sm:$0xff] %v149
  %s152 = scalar_lea.vmem %s0, 168
  %v153 = vld [vmem:[%s152] sm:$0xff]
  %s154 = scalar_lea.vmem %s1, 168
  %155 = vst [vmem:[%s154] sm:$0xff] %v153
  %s156 = scalar_lea.vmem %s0, 360
  %v157 = vld [vmem:[%s156] sm:$0xff]
  %s158 = scalar_lea.vmem %s1, 360
  %159 = vst [vmem:[%s158] sm:$0xff] %v157
  %s160 = scalar_lea.vmem %s0, 8
  %v161 = vld [vmem:[%s160] sm:$0xff]
  %s162 = scalar_lea.vmem %s1, 40
  %163 = vst [vmem:[%s162] sm:$0xff] %v161
  %s164 = scalar_lea.vmem %s0, 200
  %v165 = vld [vmem:[%s164] sm:$0xff]
  %s166 = scalar_lea.vmem %s1, 232
  %167 = vst [vmem:[%s166] sm:$0xff] %v165
  %s168 = scalar_lea.vmem %s0, 56
  %v169 = vld [vmem:[%s168] sm:$0xff]
  %s170 = scalar_lea.vmem %s1, 88
  %171 = vst [vmem:[%s170] sm:$0xff] %v169
  %s172 = scalar_lea.vmem %s0, 248
  %v173 = vld [vmem:[%s172] sm:$0xff]
  %s174 = scalar_lea.vmem %s1, 280
  %175 = vst [vmem:[%s174] sm:$0xff] %v173
  %s176 = scalar_lea.vmem %s0, 104
  %v177 = vld [vmem:[%s176] sm:$0xff]
  %s178 = scalar_lea.vmem %s1, 136
  %179 = vst [vmem:[%s178] sm:$0xff] %v177
  %s180 = scalar_lea.vmem %s0, 296
  %v181 = vld [vmem:[%s180] sm:$0xff]
  %s182 = scalar_lea.vmem %s1, 328
  %183 = vst [vmem:[%s182] sm:$0xff] %v181
  %s184 = scalar_lea.vmem %s0, 152
  %v185 = vld [vmem:[%s184] sm:$0xff]
  %s186 = scalar_lea.vmem %s1, 184
  %187 = vst [vmem:[%s186] sm:$0xff] %v185
  %s188 = scalar_lea.vmem %s0, 344
  %v189 = vld [vmem:[%s188] sm:$0xff]
  %s190 = scalar_lea.vmem %s1, 376
  %191 = vst [vmem:[%s190] sm:$0xff] %v189

</llo_original>
